<compile_context>
chip_gen: v7x
topology: tpu7x:2x2x1
jax: 0.10.0
libtpu: 0.0.40
codegen_flags: <defaults>
</compile_context>

<pallas_src>
import jax
import jax.numpy as jnp
from jax.experimental import pallas as pl
from jax.experimental.pallas import tpu as pltpu


def _round_up(x, m):
    return ((x + m - 1) // m) * m


def _pad_to(x, target_shape):
    pads = [(0, t - s) for s, t in zip(x.shape, target_shape)]
    if any(p[1] for p in pads):
        x = jnp.pad(x, pads)
    return x


def _vmem_limits():
    """Generation-aware (scoped_vmem_limit, tile-sizing budget) in bytes."""
    phys = None
    try:
        info = pltpu.get_tpu_info()
        phys = getattr(info, "vmem_capacity_bytes", None)
    except Exception:
        phys = None
    if not phys:
        phys = 64 * 1024 * 1024          # conservative default (v7x per-TC VMEM)
    # v7x (64 MiB phys)  -> ~45 MiB limit;  v5e/v6e (128 MiB) -> ~90 MiB limit.
    limit = max(32 * 1024 * 1024, min(int(phys * 0.70), 96 * 1024 * 1024))
    budget = max(16 * 1024 * 1024, int(limit * 0.85) - (2 << 20))
    return limit, budget


# --------------------------------------------------------------------------
# Kernel 1: projection weights fully VMEM-resident, no K reduction grid axis.
# --------------------------------------------------------------------------
def _tetrafine_kernel_resident(x1_ref, x2_ref, x3_ref, x4_ref,
                               wp_ref, bp_ref, wo_ref, bo_ref, o_ref):
    # x*_ref : (tm, Kp)     wp_ref : (4, Kp, Rp)   bp_ref : (4, 1, Rp)
    # wo_ref : (Rp, Np)     bo_ref : (1, Np)       o_ref  : (tm, Np)
    p = jnp.dot(x1_ref[...], wp_ref[0], preferred_element_type=jnp.float32)
    p = p + bp_ref[0]
    p = p * (jnp.dot(x2_ref[...], wp_ref[1],
                     preferred_element_type=jnp.float32) + bp_ref[1])
    p = p * (jnp.dot(x3_ref[...], wp_ref[2],
                     preferred_element_type=jnp.float32) + bp_ref[2])
    p = p * (jnp.dot(x4_ref[...], wp_ref[3],
                     preferred_element_type=jnp.float32) + bp_ref[3])
    y = jnp.dot(p.astype(wo_ref.dtype), wo_ref[...],
                preferred_element_type=jnp.float32)
    o_ref[...] = (y + bo_ref[...]).astype(o_ref.dtype)


# --------------------------------------------------------------------------
# Kernel 2 (fallback for very large K): K reduction grid + f32 accumulator.
# --------------------------------------------------------------------------
def _tetrafine_kernel_kreduce(x1_ref, x2_ref, x3_ref, x4_ref,
                              wp_ref, bp_ref, wo_ref, bo_ref,
                              o_ref, acc_ref):
    # acc_ref: (4, tm, Rp) f32 scratch, resident across the K reduction.
    k = pl.program_id(1)

    @pl.when(k == 0)
    def _init():
        # Fold the projection biases into the accumulator init.
        for idx in range(4):
            acc_ref[idx] = jnp.broadcast_to(
                bp_ref[idx], acc_ref.shape[1:]).astype(jnp.float32)

    acc_ref[0] += jnp.dot(x1_ref[...], wp_ref[0], preferred_element_type=jnp.float32)
    acc_ref[1] += jnp.dot(x2_ref[...], wp_ref[1], preferred_element_type=jnp.float32)
    acc_ref[2] += jnp.dot(x3_ref[...], wp_ref[2], preferred_element_type=jnp.float32)
    acc_ref[3] += jnp.dot(x4_ref[...], wp_ref[3], preferred_element_type=jnp.float32)

    @pl.when(k == pl.num_programs(1) - 1)
    def _epilogue():
        # Incremental product: at most two (tm, Rp) f32 temps live.
        p = acc_ref[0]
        p = p * acc_ref[1]
        p = p * acc_ref[2]
        p = p * acc_ref[3]
        y = jnp.dot(p.astype(wo_ref.dtype), wo_ref[...],
                    preferred_element_type=jnp.float32)
        o_ref[...] = (y + bo_ref[...]).astype(o_ref.dtype)


def tetrafine_forward(x1, x2, x3, x4, wp, bp, wo, bo):
    """x*: (M, K); wp: (4, K, R); bp: (4, R); wo: (R, N); bo: (N,) -> (M, N)."""
    M, K = x1.shape
    R = wp.shape[-1]
    N = wo.shape[-1]
    out_dtype = x1.dtype
    x_isz = x1.dtype.itemsize
    w_isz = wp.dtype.itemsize

    # Lane-dense padded sizes (zero padding -> semantics unchanged).
    K_p = _round_up(K, 128)
    R_p = _round_up(R, 128)
    N_p = _round_up(N, 128)

    vmem_limit, vmem_budget = _vmem_limits()

    # Pad K only when it is not 128-aligned (no-op for BERT dims); weights /
    # biases are tiny so padding them is cheap.  M is deliberately NOT padded:
    # ragged trailing M tiles are handled by the pipeline (OOB output rows are
    # never written back, and rows are independent so garbage rows are benign).
    x1p = _pad_to(x1, (M, K_p))
    x2p = _pad_to(x2, (M, K_p))
    x3p = _pad_to(x3, (M, K_p))
    x4p = _pad_to(x4, (M, K_p))
    wpp = _pad_to(wp, (4, K_p, R_p))
    bpp = _pad_to(bp.reshape(4, 1, R), (4, 1, R_p))
    wop = _pad_to(wo, (R_p, N_p))
    bop = _pad_to(bo.reshape(1, N), (1, N_p))

    # VMEM-resident weight footprint (x2: conservative double-buffer count).
    w_bytes = 2 * (4 * K_p * R_p + R_p * N_p + 4 * R_p + N_p) * w_isz

    def pick_tm(per_row_bytes, fixed_bytes):
        if M < 8:
            return M                           # block dim == full array dim
        avail = max(vmem_budget - fixed_bytes, 8 * per_row_bytes)
        tm = avail // per_row_bytes
        tm = min(tm, M, 1024)
        return max(8, (tm // 8) * 8)

    if w_bytes <= vmem_budget // 2:
        # ---------------- weights resident, 1-D grid over M ----------------
        per_row = (2 * 4 * K_p + 2 * N_p) * x_isz + (4 * R_p + 2 * N_p) * 4
        tm = pick_tm(per_row, w_bytes)
        grid = (pl.cdiv(M, tm),)

        flops = 2 * M * K_p * R_p * 4 + 2 * M * R_p * N_p
        bytes_accessed = (x_isz * (4 * M * K_p + M * N_p)
                          + w_isz * (4 * K_p * R_p + R_p * N_p + 4 * R_p + N_p))

        out = pl.pallas_call(
            _tetrafine_kernel_resident,
            out_shape=jax.ShapeDtypeStruct((M, N_p), out_dtype),
            grid_spec=pltpu.PrefetchScalarGridSpec(
                num_scalar_prefetch=0,
                grid=grid,
                in_specs=[
                    pl.BlockSpec((tm, K_p), lambda i: (i, 0)),          # x1
                    pl.BlockSpec((tm, K_p), lambda i: (i, 0)),          # x2
                    pl.BlockSpec((tm, K_p), lambda i: (i, 0)),          # x3
                    pl.BlockSpec((tm, K_p), lambda i: (i, 0)),          # x4
                    pl.BlockSpec((4, K_p, R_p), lambda i: (0, 0, 0)),   # wp (resident)
                    pl.BlockSpec((4, 1, R_p), lambda i: (0, 0, 0)),     # bp (resident)
                    pl.BlockSpec((R_p, N_p), lambda i: (0, 0)),         # wo (resident)
                    pl.BlockSpec((1, N_p), lambda i: (0, 0)),           # bo (resident)
                ],
                out_specs=pl.BlockSpec((tm, N_p), lambda i: (i, 0)),
            ),
            compiler_params=pltpu.CompilerParams(
                dimension_semantics=("parallel",),
                vmem_limit_bytes=vmem_limit,
            ),
            cost_estimate=pl.CostEstimate(
                flops=flops, transcendentals=0, bytes_accessed=bytes_accessed),
        )(x1p, x2p, x3p, x4p, wpp, bpp, wop, bop)
    else:
        # ----------- very large K: keep K reduction grid axis --------------
        tk = 128
        for cand in (2048, 1024, 512, 256):
            if K_p % cand == 0 and 2 * 4 * cand * R_p * w_isz <= vmem_budget // 4:
                tk = cand
                break
        fixed = (2 * 4 * tk * R_p + 2 * (R_p * N_p + 4 * R_p + N_p)) * w_isz
        per_row = ((2 * 4 * tk + 2 * N_p) * x_isz
                   + 4 * R_p * 4                 # f32 accumulator scratch
                   + (2 * R_p + 2 * N_p) * 4)    # epilogue temporaries
        tm = pick_tm(per_row, fixed)
        n_m = pl.cdiv(M, tm)
        grid = (n_m, K_p // tk)

        flops = 2 * M * K_p * R_p * 4 + 2 * M * R_p * N_p
        bytes_accessed = (x_isz * (4 * M * K_p + M * N_p)
                          + w_isz * n_m * (4 * K_p * R_p + R_p * N_p))

        out = pl.pallas_call(
            _tetrafine_kernel_kreduce,
            out_shape=jax.ShapeDtypeStruct((M, N_p), out_dtype),
            grid_spec=pltpu.PrefetchScalarGridSpec(
                num_scalar_prefetch=0,
                grid=grid,
                in_specs=[
                    pl.BlockSpec((tm, tk), lambda i, k: (i, k)),          # x1
                    pl.BlockSpec((tm, tk), lambda i, k: (i, k)),          # x2
                    pl.BlockSpec((tm, tk), lambda i, k: (i, k)),          # x3
                    pl.BlockSpec((tm, tk), lambda i, k: (i, k)),          # x4
                    pl.BlockSpec((4, tk, R_p), lambda i, k: (0, k, 0)),   # wp
                    pl.BlockSpec((4, 1, R_p), lambda i, k: (0, 0, 0)),    # bp
                    pl.BlockSpec((R_p, N_p), lambda i, k: (0, 0)),        # wo
                    pl.BlockSpec((1, N_p), lambda i, k: (0, 0)),          # bo
                ],
                out_specs=pl.BlockSpec((tm, N_p), lambda i, k: (i, 0)),
                scratch_shapes=[pltpu.VMEM((4, tm, R_p), jnp.float32)],
            ),
            compiler_params=pltpu.CompilerParams(
                dimension_semantics=("parallel", "arbitrary"),
                vmem_limit_bytes=vmem_limit,
            ),
            cost_estimate=pl.CostEstimate(
                flops=flops, transcendentals=0, bytes_accessed=bytes_accessed),
        )(x1p, x2p, x3p, x4p, wpp, bpp, wop, bop)

    return out[:, :N]


class TetrafinePallas:
    """JAX/Pallas port of Tetrafine(input_dim, hidden_dim, output_dim, rank) (mode=6)."""

    def __init__(self, input_dim, hidden_dim, output_dim, rank, key=None):
        self.input_dim = input_dim
        self.hidden_dim = hidden_dim   # parity only: unused in mode-6 forward
        self.output_dim = output_dim
        self.rank = rank

        key = key if key is not None else jax.random.PRNGKey(0)
        keys = jax.random.split(key, 10)

        def linear_init(kw, kb, fan_in, fan_out):
            # nn.Linear default init: U(-1/sqrt(fan_in), +1/sqrt(fan_in));
            # weights stored pre-transposed (fan_in, fan_out) so kernel does x @ W.
            bound = 1.0 / (fan_in ** 0.5)
            w = jax.random.uniform(kw, (fan_in, fan_out), jnp.float32, -bound, bound)
            b = jax.random.uniform(kb, (fan_out,), jnp.float32, -bound, bound)
            return w, b

        w1, b1 = linear_init(keys[0], keys[1], input_dim, rank)   # e1_proj
        w2, b2 = linear_init(keys[2], keys[3], input_dim, rank)   # e2_proj
        w3, b3 = linear_init(keys[4], keys[5], input_dim, rank)   # m1_proj
        w4, b4 = linear_init(keys[6], keys[7], input_dim, rank)   # m2_proj
        # Stacked (4, K, R): one weight slab kept resident inside the kernel.
        self.wp = jnp.stack([w1, w2, w3, w4], axis=0)
        self.bp = jnp.stack([b1, b2, b3, b4], axis=0)
        # encode_proj: Linear(rank -> output_dim).
        self.wo, self.bo = linear_init(keys[8], keys[9], rank, output_dim)

    def __call__(self, x1, x2, x3, x4):
        lead = x1.shape[:-1]
        K = x1.shape[-1]
        assert K == self.input_dim
        y2d = tetrafine_forward(
            x1.reshape(-1, K), x2.reshape(-1, K),
            x3.reshape(-1, K), x4.reshape(-1, K),
            self.wp, self.bp, self.wo, self.bo)
        return y2d.reshape(*lead, self.output_dim)


if __name__ == "__main__":
    key = jax.random.PRNGKey(0)
    k1, k2, k3, k4, k5, k6, k7, k8, kparams = jax.random.split(key, 9)

    # Small shapes consistent with the module (bs, n_ent, bert-dim inputs).
    batch, n_ent = 2, 8
    input_dim, hidden_dim, rank, output_dim = 768, 64, 128, 64

    mod = TetrafinePallas(input_dim, hidden_dim, output_dim, rank, key=kparams)

    hi = jax.lax.Precision.HIGHEST

    def ref_fn(a1, a2, a3, a4):
        p1 = jnp.einsum('bnd,dr->bnr', a1, mod.wp[0], precision=hi) + mod.bp[0]
        p2 = jnp.einsum('bnd,dr->bnr', a2, mod.wp[1], precision=hi) + mod.bp[1]
        p3 = jnp.einsum('bnd,dr->bnr', a3, mod.wp[2], precision=hi) + mod.bp[2]
        p4 = jnp.einsum('bnd,dr->bnr', a4, mod.wp[3], precision=hi) + mod.bp[3]
        return jnp.einsum('bnr,ro->bno', p1 * p2 * p3 * p4, mod.wo, precision=hi) + mod.bo

    # --- main test: aligned M (batch * n_ent = 16) ---
    x1 = jax.random.normal(k1, (batch, n_ent, input_dim), jnp.float32)
    x2 = jax.random.normal(k2, (batch, n_ent, input_dim), jnp.float32)
    x3 = jax.random.normal(k3, (batch, n_ent, input_dim), jnp.float32)
    x4 = jax.random.normal(k4, (batch, n_ent, input_dim), jnp.float32)
    out = jax.block_until_ready(mod(x1, x2, x3, x4))
    ref = ref_fn(x1, x2, x3, x4)
    assert out.shape == (batch, n_ent, output_dim), out.shape
    max_err = float(jnp.max(jnp.abs(out - ref)))
    assert jnp.allclose(out, ref, atol=2e-2, rtol=2e-2), f"max_err={max_err}"

    # --- ragged-M test (M = 10): no host activation padding, masked last tile ---
    n_ent2 = 5
    y1 = jax.random.normal(k5, (batch, n_ent2, input_dim), jnp.float32)
    y2 = jax.random.normal(k6, (batch, n_ent2, input_dim), jnp.float32)
    y3 = jax.random.normal(k7, (batch, n_ent2, input_dim), jnp.float32)
    y4 = jax.random.normal(k8, (batch, n_ent2, input_dim), jnp.float32)
    out2 = jax.block_until_ready(mod(y1, y2, y3, y4))
    ref2 = ref_fn(y1, y2, y3, y4)
    assert out2.shape == (batch, n_ent2, output_dim), out2.shape
    max_err2 = float(jnp.max(jnp.abs(out2 - ref2)))
    assert jnp.allclose(out2, ref2, atol=2e-2, rtol=2e-2), f"max_err={max_err2}"

    print("KERNEL_OK")
</pallas_src>

<mosaic_0001>
module attributes {stable_mosaic.version = 11 : i64} {
  func.func @_tetrafine_kernel_resident(%arg0: i32, %arg1: memref<16x768xf32, #tpu.memory_space<vmem>>, %arg2: memref<16x768xf32, #tpu.memory_space<vmem>>, %arg3: memref<16x768xf32, #tpu.memory_space<vmem>>, %arg4: memref<16x768xf32, #tpu.memory_space<vmem>>, %arg5: memref<4x768x128xf32, #tpu.memory_space<vmem>>, %arg6: memref<4x1x128xf32, #tpu.memory_space<vmem>>, %arg7: memref<128x128xf32, #tpu.memory_space<vmem>>, %arg8: memref<1x128xf32, #tpu.memory_space<vmem>>, %arg9: memref<16x128xf32, #tpu.memory_space<vmem>>) attributes {dimension_semantics = [#tpu.dimension_semantics<parallel>], iteration_bounds = array<i64: 1>, scalar_prefetch = 0 : i64, scratch_operands = 0 : i64, tpu.core_type = #tpu.core_type<tc>, window_params = [{transform_indices = @transform_0, window_bounds = array<i64: 16, 768>}, {transform_indices = @transform_1, window_bounds = array<i64: 16, 768>}, {transform_indices = @transform_2, window_bounds = array<i64: 16, 768>}, {transform_indices = @transform_3, window_bounds = array<i64: 16, 768>}, {pipeline_mode = #tpu.pipeline_mode<synchronous>, transform_indices = @transform_4, window_bounds = array<i64: 4, 768, 128>}, {pipeline_mode = #tpu.pipeline_mode<synchronous>, transform_indices = @transform_5, window_bounds = array<i64: 4, 1, 128>}, {pipeline_mode = #tpu.pipeline_mode<synchronous>, transform_indices = @transform_6, window_bounds = array<i64: 128, 128>}, {pipeline_mode = #tpu.pipeline_mode<synchronous>, transform_indices = @transform_7, window_bounds = array<i64: 1, 128>}, {transform_indices = @transform_8, window_bounds = array<i64: 16, 128>}]} {
    %c0 = arith.constant 0 : index
    %c0_0 = arith.constant 0 : index
    %0 = vector.load %arg1[%c0, %c0_0] : memref<16x768xf32, #tpu.memory_space<vmem>>, vector<16x768xf32>
    %c0_1 = arith.constant 0 : index
    %c0_2 = arith.constant 0 : index
    %c0_3 = arith.constant 0 : index
    %1 = vector.load %arg5[%c0_1, %c0_2, %c0_3] : memref<4x768x128xf32, #tpu.memory_space<vmem>>, vector<1x768x128xf32>
    %2 = vector.shape_cast %1 : vector<1x768x128xf32> to vector<768x128xf32>
    %cst = arith.constant dense<0.000000e+00> : vector<16x128xf32>
    %3 = tpu.matmul %0, %2, %cst {dimension_numbers = #tpu.dot_dimension_numbers<[1], [0], [0], [1], [0, 0, 1, 1], [], []>} : vector<16x768xf32>, vector<768x128xf32>, vector<16x128xf32> -> vector<16x128xf32>
    %c0_4 = arith.constant 0 : index
    %c0_5 = arith.constant 0 : index
    %c0_6 = arith.constant 0 : index
    %4 = vector.load %arg6[%c0_4, %c0_5, %c0_6] : memref<4x1x128xf32, #tpu.memory_space<vmem>>, vector<1x1x128xf32>
    %5 = vector.shape_cast %4 : vector<1x1x128xf32> to vector<1x128xf32>
    %6 = vector.broadcast %5 : vector<1x128xf32> to vector<16x128xf32>
    %7 = arith.addf %3, %6 : vector<16x128xf32>
    %c0_7 = arith.constant 0 : index
    %c0_8 = arith.constant 0 : index
    %8 = vector.load %arg2[%c0_7, %c0_8] : memref<16x768xf32, #tpu.memory_space<vmem>>, vector<16x768xf32>
    %c1 = arith.constant 1 : index
    %c0_9 = arith.constant 0 : index
    %c0_10 = arith.constant 0 : index
    %9 = vector.load %arg5[%c1, %c0_9, %c0_10] : memref<4x768x128xf32, #tpu.memory_space<vmem>>, vector<1x768x128xf32>
    %10 = vector.shape_cast %9 : vector<1x768x128xf32> to vector<768x128xf32>
    %cst_11 = arith.constant dense<0.000000e+00> : vector<16x128xf32>
    %11 = tpu.matmul %8, %10, %cst_11 {dimension_numbers = #tpu.dot_dimension_numbers<[1], [0], [0], [1], [0, 0, 1, 1], [], []>} : vector<16x768xf32>, vector<768x128xf32>, vector<16x128xf32> -> vector<16x128xf32>
    %c1_12 = arith.constant 1 : index
    %c0_13 = arith.constant 0 : index
    %c0_14 = arith.constant 0 : index
    %12 = vector.load %arg6[%c1_12, %c0_13, %c0_14] : memref<4x1x128xf32, #tpu.memory_space<vmem>>, vector<1x1x128xf32>
    %13 = vector.shape_cast %12 : vector<1x1x128xf32> to vector<1x128xf32>
    %14 = vector.broadcast %13 : vector<1x128xf32> to vector<16x128xf32>
    %15 = arith.addf %11, %14 : vector<16x128xf32>
    %16 = arith.mulf %7, %15 : vector<16x128xf32>
    %c0_15 = arith.constant 0 : index
    %c0_16 = arith.constant 0 : index
    %17 = vector.load %arg3[%c0_15, %c0_16] : memref<16x768xf32, #tpu.memory_space<vmem>>, vector<16x768xf32>
    %c2 = arith.constant 2 : index
    %c0_17 = arith.constant 0 : index
    %c0_18 = arith.constant 0 : index
    %18 = vector.load %arg5[%c2, %c0_17, %c0_18] : memref<4x768x128xf32, #tpu.memory_space<vmem>>, vector<1x768x128xf32>
    %19 = vector.shape_cast %18 : vector<1x768x128xf32> to vector<768x128xf32>
    %cst_19 = arith.constant dense<0.000000e+00> : vector<16x128xf32>
    %20 = tpu.matmul %17, %19, %cst_19 {dimension_numbers = #tpu.dot_dimension_numbers<[1], [0], [0], [1], [0, 0, 1, 1], [], []>} : vector<16x768xf32>, vector<768x128xf32>, vector<16x128xf32> -> vector<16x128xf32>
    %c2_20 = arith.constant 2 : index
    %c0_21 = arith.constant 0 : index
    %c0_22 = arith.constant 0 : index
    %21 = vector.load %arg6[%c2_20, %c0_21, %c0_22] : memref<4x1x128xf32, #tpu.memory_space<vmem>>, vector<1x1x128xf32>
    %22 = vector.shape_cast %21 : vector<1x1x128xf32> to vector<1x128xf32>
    %23 = vector.broadcast %22 : vector<1x128xf32> to vector<16x128xf32>
    %24 = arith.addf %20, %23 : vector<16x128xf32>
    %25 = arith.mulf %16, %24 : vector<16x128xf32>
    %c0_23 = arith.constant 0 : index
    %c0_24 = arith.constant 0 : index
    %26 = vector.load %arg4[%c0_23, %c0_24] : memref<16x768xf32, #tpu.memory_space<vmem>>, vector<16x768xf32>
    %c3 = arith.constant 3 : index
    %c0_25 = arith.constant 0 : index
    %c0_26 = arith.constant 0 : index
    %27 = vector.load %arg5[%c3, %c0_25, %c0_26] : memref<4x768x128xf32, #tpu.memory_space<vmem>>, vector<1x768x128xf32>
    %28 = vector.shape_cast %27 : vector<1x768x128xf32> to vector<768x128xf32>
    %cst_27 = arith.constant dense<0.000000e+00> : vector<16x128xf32>
    %29 = tpu.matmul %26, %28, %cst_27 {dimension_numbers = #tpu.dot_dimension_numbers<[1], [0], [0], [1], [0, 0, 1, 1], [], []>} : vector<16x768xf32>, vector<768x128xf32>, vector<16x128xf32> -> vector<16x128xf32>
    %c3_28 = arith.constant 3 : index
    %c0_29 = arith.constant 0 : index
    %c0_30 = arith.constant 0 : index
    %30 = vector.load %arg6[%c3_28, %c0_29, %c0_30] : memref<4x1x128xf32, #tpu.memory_space<vmem>>, vector<1x1x128xf32>
    %31 = vector.shape_cast %30 : vector<1x1x128xf32> to vector<1x128xf32>
    %32 = vector.broadcast %31 : vector<1x128xf32> to vector<16x128xf32>
    %33 = arith.addf %29, %32 : vector<16x128xf32>
    %34 = arith.mulf %25, %33 : vector<16x128xf32>
    %c0_31 = arith.constant 0 : index
    %c0_32 = arith.constant 0 : index
    %35 = vector.load %arg7[%c0_31, %c0_32] : memref<128x128xf32, #tpu.memory_space<vmem>>, vector<128x128xf32>
    %cst_33 = arith.constant dense<0.000000e+00> : vector<16x128xf32>
    %36 = tpu.matmul %34, %35, %cst_33 {dimension_numbers = #tpu.dot_dimension_numbers<[1], [0], [0], [1], [0, 0, 1, 1], [], []>} : vector<16x128xf32>, vector<128x128xf32>, vector<16x128xf32> -> vector<16x128xf32>
    %c0_34 = arith.constant 0 : index
    %c0_35 = arith.constant 0 : index
    %37 = vector.load %arg8[%c0_34, %c0_35] : memref<1x128xf32, #tpu.memory_space<vmem>>, vector<1x128xf32>
    %38 = vector.broadcast %37 : vector<1x128xf32> to vector<16x128xf32>
    %39 = arith.addf %36, %38 : vector<16x128xf32>
    %c0_36 = arith.constant 0 : index
    %c0_37 = arith.constant 0 : index
    %40 = vector.load %arg9[%c0_36, %c0_37] : memref<16x128xf32, #tpu.memory_space<vmem>>, vector<16x128xf32>
    tpu.vector_store %arg9[%c0_36, %c0_37], %39 {strides = array<i32>} : memref<16x128xf32, #tpu.memory_space<vmem>>, vector<16x128xf32>,
    return
  }
  func.func @transform_0(%arg0: i32) -> (i32, i32) {
    %c0_i32 = arith.constant 0 : i32
    %c0_i32_0 = arith.constant 0 : i32
    return %arg0, %c0_i32 : i32, i32
  }
  func.func @transform_1(%arg0: i32) -> (i32, i32) {
    %c0_i32 = arith.constant 0 : i32
    %c0_i32_0 = arith.constant 0 : i32
    return %arg0, %c0_i32 : i32, i32
  }
  func.func @transform_2(%arg0: i32) -> (i32, i32) {
    %c0_i32 = arith.constant 0 : i32
    %c0_i32_0 = arith.constant 0 : i32
    return %arg0, %c0_i32 : i32, i32
  }
  func.func @transform_3(%arg0: i32) -> (i32, i32) {
    %c0_i32 = arith.constant 0 : i32
    %c0_i32_0 = arith.constant 0 : i32
    return %arg0, %c0_i32 : i32, i32
  }
  func.func @transform_4(%arg0: i32) -> (i32, i32, i32) {
    %c0_i32 = arith.constant 0 : i32
    %c0_i32_0 = arith.constant 0 : i32
    %c0_i32_1 = arith.constant 0 : i32
    %c0_i32_2 = arith.constant 0 : i32
    return %c0_i32, %c0_i32_0, %c0_i32_1 : i32, i32, i32
  }
  func.func @transform_5(%arg0: i32) -> (i32, i32, i32) {
    %c0_i32 = arith.constant 0 : i32
    %c0_i32_0 = arith.constant 0 : i32
    %c0_i32_1 = arith.constant 0 : i32
    %c0_i32_2 = arith.constant 0 : i32
    return %c0_i32, %c0_i32_0, %c0_i32_1 : i32, i32, i32
  }
  func.func @transform_6(%arg0: i32) -> (i32, i32) {
    %c0_i32 = arith.constant 0 : i32
    %c0_i32_0 = arith.constant 0 : i32
    %c0_i32_1 = arith.constant 0 : i32
    return %c0_i32, %c0_i32_0 : i32, i32
  }
  func.func @transform_7(%arg0: i32) -> (i32, i32) {
    %c0_i32 = arith.constant 0 : i32
    %c0_i32_0 = arith.constant 0 : i32
    %c0_i32_1 = arith.constant 0 : i32
    return %c0_i32, %c0_i32_0 : i32, i32
  }
  func.func @transform_8(%arg0: i32) -> (i32, i32) {
    %c0_i32 = arith.constant 0 : i32
    %c0_i32_0 = arith.constant 0 : i32
    return %arg0, %c0_i32 : i32, i32
  }
}

</mosaic_0001>

<llo_original>
// kernel: tpu_custom_call.1
$region0: #{tpu_custom_call.1}
  #allocation0 [shape = 'u32[]', space=smem, size = 0x4, offset = 0x4, fixed_abs, tag = 'smem constant byte address 0x4 - core index']
  #allocation1 [shape = 'u32[144,128]{1,0:T(1,128)}', space=vmem, size = 0x12000, scoped, tag = 'internal scratch']
  %s0 = inlined_call_operand.hbm [shape: f32[16,768], index: 0, kind: input, shape index: {}]
  %s1 = inlined_call_operand.hbm [shape: f32[16,768], index: 1, kind: input, shape index: {}]
  %s2 = inlined_call_operand.hbm [shape: f32[16,768], index: 2, kind: input, shape index: {}]
  %s3 = inlined_call_operand.hbm [shape: f32[16,768], index: 3, kind: input, shape index: {}]
  %s4 = inlined_call_operand.hbm [shape: f32[4,768,128], index: 4, kind: input, shape index: {}]
  %s5 = inlined_call_operand.hbm [shape: f32[4,1,128], index: 5, kind: input, shape index: {}]
  %s6 = inlined_call_operand.hbm [shape: f32[128,128], index: 6, kind: input, shape index: {}]
  %s7 = inlined_call_operand.hbm [shape: f32[1,128], index: 7, kind: input, shape index: {}]
  %s8 = inlined_call_operand.hbm [shape: f32[16,128], index: 8, kind: output, shape index: {}]
  %s9 = sld [smem:[#allocation0]]
  $region74: #{tpu_custom_call.1} parent=0
    _
  %s11 = ssub.s32 1, %s9
  %s12 = scalar_select 0, %s11, %s9
  $region1: #{tpu_custom_call.1} parent=0
    #allocation2 [shape = 'u8[49152]{0}', space=vmem, size = 0xc000, scoped, tag = 'input window, operand 0, single buffered']
    #allocation3 [shape = 's32[1]{0}', space=sflag, size = 0x4, scoped, tag = 'scoped memory for tpu_custom_call.1']
    #allocation4 [shape = 's32[1]{0}', space=sflag, size = 0x4, scoped, tag = 'scoped memory for tpu_custom_call.1']
    #allocation5 [shape = 'u8[49152]{0}', space=vmem, size = 0xc000, scoped, tag = 'input window, operand 1, single buffered']
    #allocation6 [shape = 's32[1]{0}', space=sflag, size = 0x4, scoped, tag = 'scoped memory for tpu_custom_call.1']
    #allocation7 [shape = 'u8[49152]{0}', space=vmem, size = 0xc000, scoped, tag = 'input window, operand 2, single buffered']
    #allocation8 [shape = 'u8[49152]{0}', space=vmem, size = 0xc000, scoped, tag = 'input window, operand 3, single buffered']
    #allocation9 [shape = 's32[1]{0}', space=sflag, size = 0x4, scoped, tag = 'scoped memory for tpu_custom_call.1']
    #allocation10 [shape = 'u8[1572864]{0}', space=vmem, size = 0x180000, scoped, tag = 'input window, operand 4, single buffered']
    #allocation11 [shape = 'u8[2048]{0}', space=vmem, size = 0x800, scoped, tag = 'input window, operand 5, single buffered']
    #allocation12 [shape = 's32[1]{0}', space=sflag, size = 0x4, scoped, tag = 'scoped memory for tpu_custom_call.1']
    #allocation13 [shape = 'u8[65536]{0}', space=vmem, size = 0x10000, scoped, tag = 'input window, operand 6, single buffered']
    #allocation14 [shape = 'u8[512]{0}', space=vmem, size = 0x400, scoped, tag = 'input window, operand 7, single buffered']
    #allocation15 [shape = 's32[1]{0}', space=sflag, size = 0x4, scoped, tag = 'scoped memory for tpu_custom_call.1']
    #allocation16 [shape = 'u8[8192]{0}', space=vmem, size = 0x2000, scoped, tag = 'output window, operand 0, single buffered']
    %13 = vsyncpa [#allocation3], 0
    %14 = vsyncpa [#allocation6], 0
    %15 = vsyncpa [#allocation9], 0
    %16 = vsyncpa [#allocation12], 0
    %17 = vsyncpa [#allocation15], 0
    %18 = vsyncpa [#allocation4], 0
    // Predicated region
    $region2: #{tpu_custom_call.1} parent=1 // pred_check
      _
    $region3: #{tpu_custom_call.1} parent=1 // pred_check_branch
      %20 = sbr.rel (0) target = $region5
    $region4: #{tpu_custom_call.1} parent=1 // pred_region
      %s22 = ssub.s32 1536, 1536
      %23 = vsyncadd [#allocation3], %s22
      %s24 = sshll.u32 [#allocation2], 4
      %s25 = int_to_ptr.vmem [resolvable:$true] %s24
      %30 = dma.hbm_to_vmem [thread:$0]  %s0, 1536, %s25, [#allocation3], 768, 768, 48
    $region5: #{tpu_custom_call.1} parent=1 // pred_fallthru
      _
    // Predicated region
    $region6: #{tpu_custom_call.1} parent=1 // pred_check
      _
    $region7: #{tpu_custom_call.1} parent=1 // pred_check_branch
      %32 = sbr.rel (0) target = $region9
    $region8: #{tpu_custom_call.1} parent=1 // pred_region
      %s34 = ssub.s32 1536, 1536
      %35 = vsyncadd [#allocation6], %s34
      %s36 = sshll.u32 [#allocation5], 4
      %s37 = int_to_ptr.vmem [resolvable:$true] %s36
      %42 = dma.hbm_to_vmem [thread:$0]  %s1, 1536, %s37, [#allocation6], 768, 768, 48
    $region9: #{tpu_custom_call.1} parent=1 // pred_fallthru
      _
    // Predicated region
    $region10: #{tpu_custom_call.1} parent=1 // pred_check
      _
    $region11: #{tpu_custom_call.1} parent=1 // pred_check_branch
      %44 = sbr.rel (0) target = $region13
    $region12: #{tpu_custom_call.1} parent=1 // pred_region
      %s46 = ssub.s32 1536, 1536
      %47 = vsyncadd [#allocation6], %s46
      %s48 = sshll.u32 [#allocation7], 4
      %s49 = int_to_ptr.vmem [resolvable:$true] %s48
      %54 = dma.hbm_to_vmem [thread:$0]  %s2, 1536, %s49, [#allocation6], 768, 768, 48
    $region13: #{tpu_custom_call.1} parent=1 // pred_fallthru
      _
    // Predicated region
    $region14: #{tpu_custom_call.1} parent=1 // pred_check
      _
    $region15: #{tpu_custom_call.1} parent=1 // pred_check_branch
      %56 = sbr.rel (0) target = $region17
    $region16: #{tpu_custom_call.1} parent=1 // pred_region
      %s58 = ssub.s32 1536, 1536
      %59 = vsyncadd [#allocation9], %s58
      %s60 = sshll.u32 [#allocation8], 4
      %s61 = int_to_ptr.vmem [resolvable:$true] %s60
      %66 = dma.hbm_to_vmem [thread:$0]  %s3, 1536, %s61, [#allocation9], 768, 768, 48
    $region17: #{tpu_custom_call.1} parent=1 // pred_fallthru
      _
    // Predicated region
    $region18: #{tpu_custom_call.1} parent=1 // pred_check
      _
    $region19: #{tpu_custom_call.1} parent=1 // pred_check_branch
      %68 = sbr.rel (0) target = $region21
    $region20: #{tpu_custom_call.1} parent=1 // pred_region
      %s70 = ssub.s32 49152, 49152
      %71 = vsyncadd [#allocation9], %s70
      %s72 = sshll.u32 [#allocation10], 4
      %s73 = int_to_ptr.vmem [resolvable:$true] %s72
      %78 = dma.hbm_to_vmem [thread:$0]  %s4, 49152, %s73, [#allocation9], 128, 128, 8
    $region21: #{tpu_custom_call.1} parent=1 // pred_fallthru
      _
    // Predicated region
    $region22: #{tpu_custom_call.1} parent=1 // pred_check
      _
    $region23: #{tpu_custom_call.1} parent=1 // pred_check_branch
      %80 = sbr.rel (0) target = $region25
    $region24: #{tpu_custom_call.1} parent=1 // pred_region
      %s82 = ssub.s32 64, 64
      %83 = vsyncadd [#allocation12], %s82
      %s84 = sshll.u32 [#allocation11], 4
      %s85 = int_to_ptr.vmem [resolvable:$true] %s84
      %90 = dma.hbm_to_vmem [thread:$0]  %s5, 64, %s85, [#allocation12], 16, 16, 1
    $region25: #{tpu_custom_call.1} parent=1 // pred_fallthru
      _
    // Predicated region
    $region26: #{tpu_custom_call.1} parent=1 // pred_check
      _
    $region27: #{tpu_custom_call.1} parent=1 // pred_check_branch
      %92 = sbr.rel (0) target = $region29
    $region28: #{tpu_custom_call.1} parent=1 // pred_region
      %s94 = ssub.s32 2048, 2048
      %95 = vsyncadd [#allocation12], %s94
      %s96 = sshll.u32 [#allocation13], 4
      %s97 = int_to_ptr.vmem [resolvable:$true] %s96
      %102 = dma.hbm_to_vmem [thread:$0]  %s6, 2048, %s97, [#allocation12], 128, 128, 8
    $region29: #{tpu_custom_call.1} parent=1 // pred_fallthru
      _
    // Predicated region
    $region30: #{tpu_custom_call.1} parent=1 // pred_check
      _
    $region31: #{tpu_custom_call.1} parent=1 // pred_check_branch
      %104 = sbr.rel (0) target = $region33
    $region32: #{tpu_custom_call.1} parent=1 // pred_region
      %s106 = ssub.s32 16, 16
      %107 = vsyncadd [#allocation15], %s106
      %s109 = sshll.u32 [#allocation14], 4
      %s110 = int_to_ptr.vmem [resolvable:$true] %s109
      %112 = dma.hbm_to_vmem [thread:$0]  %s7, 16, %s110, [#allocation15]
    $region33: #{tpu_custom_call.1} parent=1 // pred_fallthru
      _
    // Predicated region
    $region34: #{tpu_custom_call.1} parent=1 // pred_check
      _
    $region35: #{tpu_custom_call.1} parent=1 // pred_check_branch
      %114 = sbr.rel (0) target = $region37
    $region36: #{tpu_custom_call.1} parent=1 // pred_region
      %115 = dma.done [#allocation3], 1536
    $region37: #{tpu_custom_call.1} parent=1 // pred_fallthru
      _
    // Predicated region
    $region38: #{tpu_custom_call.1} parent=1 // pred_check
      _
    $region39: #{tpu_custom_call.1} parent=1 // pred_check_branch
      %117 = sbr.rel (0) target = $region41
    $region40: #{tpu_custom_call.1} parent=1 // pred_region
      %118 = dma.done [#allocation6], 1536
    $region41: #{tpu_custom_call.1} parent=1 // pred_fallthru
      _
    // Predicated region
    $region42: #{tpu_custom_call.1} parent=1 // pred_check
      _
    $region43: #{tpu_custom_call.1} parent=1 // pred_check_branch
      %120 = sbr.rel (0) target = $region45
    $region44: #{tpu_custom_call.1} parent=1 // pred_region
      %121 = dma.done [#allocation6], 1536
    $region45: #{tpu_custom_call.1} parent=1 // pred_fallthru
      _
    // Predicated region
    $region46: #{tpu_custom_call.1} parent=1 // pred_check
      _
    $region47: #{tpu_custom_call.1} parent=1 // pred_check_branch
      %123 = sbr.rel (0) target = $region49
    $region48: #{tpu_custom_call.1} parent=1 // pred_region
      %124 = dma.done [#allocation9], 1536
    $region49: #{tpu_custom_call.1} parent=1 // pred_fallthru
      _
    // Predicated region
    $region50: #{tpu_custom_call.1} parent=1 // pred_check
      _
    $region51: #{tpu_custom_call.1} parent=1 // pred_check_branch
      %126 = sbr.rel (0) target = $region53
    $region52: #{tpu_custom_call.1} parent=1 // pred_region
      %127 = dma.done [#allocation9], 49152
    $region53: #{tpu_custom_call.1} parent=1 // pred_fallthru
      _
    // Predicated region
    $region54: #{tpu_custom_call.1} parent=1 // pred_check
      _
    $region55: #{tpu_custom_call.1} parent=1 // pred_check_branch
      %129 = sbr.rel (0) target = $region57
    $region56: #{tpu_custom_call.1} parent=1 // pred_region
      %130 = dma.done [#allocation12], 64
    $region57: #{tpu_custom_call.1} parent=1 // pred_fallthru
      _
    // Predicated region
    $region58: #{tpu_custom_call.1} parent=1 // pred_check
      _
    $region59: #{tpu_custom_call.1} parent=1 // pred_check_branch
      %132 = sbr.rel (0) target = $region61
    $region60: #{tpu_custom_call.1} parent=1 // pred_region
      %133 = dma.done [#allocation12], 2048
    $region61: #{tpu_custom_call.1} parent=1 // pred_fallthru
      _
    // Predicated region
    $region62: #{tpu_custom_call.1} parent=1 // pred_check
      _
    $region63: #{tpu_custom_call.1} parent=1 // pred_check_branch
      %135 = sbr.rel (0) target = $region65
    $region64: #{tpu_custom_call.1} parent=1 // pred_region
      %136 = dma.done [#allocation15], 16
    $region65: #{tpu_custom_call.1} parent=1 // pred_fallthru
      _
    %v137 = vld [vmem:[#allocation2] sm:$0xff]
    %v138 = vld [vmem:[#allocation2 + $0x8] sm:$0xff]
    %v139 = vld [vmem:[#allocation2 + $0x10] sm:$0xff]
    %v140 = vld [vmem:[#allocation2 + $0x18] sm:$0xff]
    %v141 = vld [vmem:[#allocation2 + $0x20] sm:$0xff]
    %v142 = vld [vmem:[#allocation2 + $0x28] sm:$0xff]
    %v143 = vld [vmem:[#allocation2 + $0x30] sm:$0xff]
    %v144 = vld [vmem:[#allocation2 + $0x38] sm:$0xff]
    %v145 = vld [vmem:[#allocation2 + $0x40] sm:$0xff]
    %v146 = vld [vmem:[#allocation2 + $0x48] sm:$0xff]
    %v147 = vld [vmem:[#allocation2 + $0x50] sm:$0xff]
    %v148 = vld [vmem:[#allocation2 + $0x58] sm:$0xff]
    %v149 = vld [vmem:[#allocation10] sm:$0xff]
    %v150 = vld [vmem:[#allocation10 + $0x8] sm:$0xff]
    %v151 = vld [vmem:[#allocation10 + $0x10] sm:$0xff]
    %v152 = vld [vmem:[#allocation10 + $0x18] sm:$0xff]
    %v153 = vld [vmem:[#allocation10 + $0x20] sm:$0xff]
    %v154 = vld [vmem:[#allocation10 + $0x28] sm:$0xff]
    %v155 = vld [vmem:[#allocation10 + $0x30] sm:$0xff]
    %v156 = vld [vmem:[#allocation10 + $0x38] sm:$0xff]
    %v157 = vld [vmem:[#allocation10 + $0x40] sm:$0xff]
    %v158 = vld [vmem:[#allocation10 + $0x48] sm:$0xff]
    %v159 = vld [vmem:[#allocation10 + $0x50] sm:$0xff]
    %v160 = vld [vmem:[#allocation10 + $0x58] sm:$0xff]
    %v161 = vld [vmem:[#allocation10 + $0x60] sm:$0xff]
    %v162 = vld [vmem:[#allocation10 + $0x68] sm:$0xff]
    %v163 = vld [vmem:[#allocation10 + $0x70] sm:$0xff]
    %v164 = vld [vmem:[#allocation10 + $0x78] sm:$0xff]
    %v165 = vld [vmem:[#allocation10 + $0x80] sm:$0xff]
    %v166 = vld [vmem:[#allocation10 + $0x88] sm:$0xff]
    %v167 = vld [vmem:[#allocation10 + $0x90] sm:$0xff]
    %v168 = vld [vmem:[#allocation10 + $0x98] sm:$0xff]
    %v169 = vld [vmem:[#allocation10 + $0xa0] sm:$0xff]
    %v170 = vld [vmem:[#allocation10 + $0xa8] sm:$0xff]
    %v171 = vld [vmem:[#allocation10 + $0xb0] sm:$0xff]
    %v172 = vld [vmem:[#allocation10 + $0xb8] sm:$0xff]
    %v173 = vld [vmem:[#allocation10 + $0xc0] sm:$0xff]
    %v174 = vld [vmem:[#allocation10 + $0xc8] sm:$0xff]
    %v175 = vld [vmem:[#allocation10 + $0xd0] sm:$0xff]
    %v176 = vld [vmem:[#allocation10 + $0xd8] sm:$0xff]
    %v177 = vld [vmem:[#allocation10 + $0xe0] sm:$0xff]
    %v178 = vld [vmem:[#allocation10 + $0xe8] sm:$0xff]
    %v179 = vld [vmem:[#allocation10 + $0xf0] sm:$0xff]
    %v180 = vld [vmem:[#allocation10 + $0xf8] sm:$0xff]
    %v181 = vld [vmem:[#allocation10 + $0x100] sm:$0xff]
    %v182 = vld [vmem:[#allocation10 + $0x108] sm:$0xff]
    %v183 = vld [vmem:[#allocation10 + $0x110] sm:$0xff]
    %v184 = vld [vmem:[#allocation10 + $0x118] sm:$0xff]
    %v185 = vld [vmem:[#allocation10 + $0x120] sm:$0xff]
    %v186 = vld [vmem:[#allocation10 + $0x128] sm:$0xff]
    %v187 = vld [vmem:[#allocation10 + $0x130] sm:$0xff]
    %v188 = vld [vmem:[#allocation10 + $0x138] sm:$0xff]
    %v189 = vld [vmem:[#allocation10 + $0x140] sm:$0xff]
    %v190 = vld [vmem:[#allocation10 + $0x148] sm:$0xff]
    %v191 = vld [vmem:[#allocation10 + $0x150] sm:$0xff]
    %v192 = vld [vmem:[#allocation10 + $0x158] sm:$0xff]
    %v193 = vld [vmem:[#allocation10 + $0x160] sm:$0xff]
    %v194 = vld [vmem:[#allocation10 + $0x168] sm:$0xff]
    %v195 = vld [vmem:[#allocation10 + $0x170] sm:$0xff]
    %v196 = vld [vmem:[#allocation10 + $0x178] sm:$0xff]
    %v197 = vld [vmem:[#allocation10 + $0x180] sm:$0xff]
    %v198 = vld [vmem:[#allocation10 + $0x188] sm:$0xff]
    %v199 = vld [vmem:[#allocation10 + $0x190] sm:$0xff]
    %v200 = vld [vmem:[#allocation10 + $0x198] sm:$0xff]
    %v201 = vld [vmem:[#allocation10 + $0x1a0] sm:$0xff]
    %v202 = vld [vmem:[#allocation10 + $0x1a8] sm:$0xff]
    %v203 = vld [vmem:[#allocation10 + $0x1b0] sm:$0xff]
    %v204 = vld [vmem:[#allocation10 + $0x1b8] sm:$0xff]
    %v205 = vld [vmem:[#allocation10 + $0x1c0] sm:$0xff]
    %v206 = vld [vmem:[#allocation10 + $0x1c8] sm:$0xff]
    %v207 = vld [vmem:[#allocation10 + $0x1d0] sm:$0xff]
    %v208 = vld [vmem:[#allocation10 + $0x1d8] sm:$0xff]
    %v209 = vld [vmem:[#allocation10 + $0x1e0] sm:$0xff]
    %v210 = vld [vmem:[#allocation10 + $0x1e8] sm:$0xff]
    %v211 = vld [vmem:[#allocation10 + $0x1f0] sm:$0xff]
    %v212 = vld [vmem:[#allocation10 + $0x1f8] sm:$0xff]
    %v213 = vld [vmem:[#allocation10 + $0x200] sm:$0xff]
    %v214 = vld [vmem:[#allocation10 + $0x208] sm:$0xff]
    %v215 = vld [vmem:[#allocation10 + $0x210] sm:$0xff]
    %v216 = vld [vmem:[#allocation10 + $0x218] sm:$0xff]
    %v217 = vld [vmem:[#allocation10 + $0x220] sm:$0xff]
    %v218 = vld [vmem:[#allocation10 + $0x228] sm:$0xff]
    %v219 = vld [vmem:[#allocation10 + $0x230] sm:$0xff]
    %v220 = vld [vmem:[#allocation10 + $0x238] sm:$0xff]
    %v221 = vld [vmem:[#allocation10 + $0x240] sm:$0xff]
    %v222 = vld [vmem:[#allocation10 + $0x248] sm:$0xff]
    %v223 = vld [vmem:[#allocation10 + $0x250] sm:$0xff]
    %v224 = vld [vmem:[#allocation10 + $0x258] sm:$0xff]
    %v225 = vld [vmem:[#allocation10 + $0x260] sm:$0xff]
    %v226 = vld [vmem:[#allocation10 + $0x268] sm:$0xff]
    %v227 = vld [vmem:[#allocation10 + $0x270] sm:$0xff]
    %v228 = vld [vmem:[#allocation10 + $0x278] sm:$0xff]
    %v229 = vld [vmem:[#allocation10 + $0x280] sm:$0xff]
    %v230 = vld [vmem:[#allocation10 + $0x288] sm:$0xff]
    %v231 = vld [vmem:[#allocation10 + $0x290] sm:$0xff]
    %v232 = vld [vmem:[#allocation10 + $0x298] sm:$0xff]
    %v233 = vld [vmem:[#allocation10 + $0x2a0] sm:$0xff]
    %v234 = vld [vmem:[#allocation10 + $0x2a8] sm:$0xff]
    %v235 = vld [vmem:[#allocation10 + $0x2b0] sm:$0xff]
    %v236 = vld [vmem:[#allocation10 + $0x2b8] sm:$0xff]
    %v237 = vld [vmem:[#allocation10 + $0x2c0] sm:$0xff]
    %v238 = vld [vmem:[#allocation10 + $0x2c8] sm:$0xff]
    %v239 = vld [vmem:[#allocation10 + $0x2d0] sm:$0xff]
    %v240 = vld [vmem:[#allocation10 + $0x2d8] sm:$0xff]
    %v241 = vld [vmem:[#allocation10 + $0x2e0] sm:$0xff]
    %v242 = vld [vmem:[#allocation10 + $0x2e8] sm:$0xff]
    %v243 = vld [vmem:[#allocation10 + $0x2f0] sm:$0xff]
    %v244 = vld [vmem:[#allocation10 + $0x2f8] sm:$0xff]
    %v245 = vld [vmem:[#allocation11] sm:$0x1]
    %v247 = vlaneseq
    %v248 = vshrl.u32 %v247, 7
    %v249 = vsub.s32 0, %v248
    %v250 = vrot.slane %v245, %v249
    %252 = vmatprep.subr.mxu0 0.0
    %253 = vmatpush1.msra.mxu0 %v149
    %254 = vmatprep.subr.mxu0 0.0
    %255 = vmatpush1.msra.mxu0 %v150
    %256 = vmatprep.subr.mxu0 0.0
    %257 = vmatpush1.msra.mxu0 %v151
    %258 = vmatprep.subr.mxu0 0.0
    %259 = vmatpush1.msra.mxu0 %v152
    %260 = vmatprep.subr.mxu0 0.0
    %261 = vmatpush1.msra.mxu0 %v153
    %262 = vmatprep.subr.mxu0 0.0
    %263 = vmatpush1.msra.mxu0 %v154
    %264 = vmatprep.subr.mxu0 0.0
    %265 = vmatpush1.msra.mxu0 %v155
    %266 = vmatprep.subr.mxu0 0.0
    %267 = vmatpush1.msra.mxu0 %v156
    %268 = vmatprep.subr.mxu0 0.0
    %269 = vmatpush1.msra.mxu0 %v157
    %270 = vmatprep.subr.mxu0 0.0
    %271 = vmatpush1.msra.mxu0 %v158
    %272 = vmatprep.subr.mxu0 0.0
    %273 = vmatpush1.msra.mxu0 %v159
    %274 = vmatprep.subr.mxu0 0.0
    %275 = vmatpush1.msra.mxu0 %v160
    %276 = vmatprep.subr.mxu0 0.0
    %277 = vmatpush1.msra.mxu0 %v161
    %278 = vmatprep.subr.mxu0 0.0
    %279 = vmatpush1.msra.mxu0 %v162
    %280 = vmatprep.subr.mxu0 0.0
    %281 = vmatpush1.msra.mxu0 %v163
    %282 = vmatprep.subr.mxu0 0.0
    %283 = vmatpush1.msra.mxu0 %v164
    %284 = vmatprep.subr.mxu0 0.0
    %285 = vmatpush1.msra.mxu0 %v165
    %286 = vmatprep.subr.mxu0 0.0
    %287 = vmatpush1.msra.mxu0 %v166
    %288 = vmatprep.subr.mxu0 0.0
    %289 = vmatpush1.msra.mxu0 %v167
    %290 = vmatprep.subr.mxu0 0.0
    %291 = vmatpush1.msra.mxu0 %v168
    %292 = vmatprep.subr.mxu0 0.0
    %293 = vmatpush1.msra.mxu0 %v169
    %294 = vmatprep.subr.mxu0 0.0
    %295 = vmatpush1.msra.mxu0 %v170
    %296 = vmatprep.subr.mxu0 0.0
    %297 = vmatpush1.msra.mxu0 %v171
    %298 = vmatprep.subr.mxu0 0.0
    %299 = vmatpush1.msra.mxu0 %v172
    %300 = vmatprep.subr.mxu0 0.0
    %301 = vmatpush1.msra.mxu0 %v173
    %302 = vmatprep.subr.mxu0 0.0
    %303 = vmatpush1.msra.mxu0 %v174
    %304 = vmatprep.subr.mxu0 0.0
    %305 = vmatpush1.msra.mxu0 %v175
    %306 = vmatprep.subr.mxu0 0.0
    %307 = vmatpush1.msra.mxu0 %v176
    %308 = vmatprep.subr.mxu0 0.0
    %309 = vmatpush1.msra.mxu0 %v177
    %310 = vmatprep.subr.mxu0 0.0
    %311 = vmatpush1.msra.mxu0 %v178
    %312 = vmatprep.subr.mxu0 0.0
    %313 = vmatpush1.msra.mxu0 %v179
    %314 = vmatprep.subr.mxu0 0.0
    %315 = vmatpush1.msra.mxu0 %v180
    %316 = vmatprep.mubr.f32.mxu0 %v138
    %317 = vmatmul.mubr.f32.gmra.mrb[0].mxu0 %v137
    %v318 = vpop.f32.mrb[0].mxu0
    %v319 = vadd.f32 %v250, %v318
    %v320 = vpop.f32.mrb[0].mxu0
    %321 = vmatprep.mubr.f32.mxu0 %v144
    %322 = vmatmul.mubr.f32.gmra.mrb[0].mxu0 %v143
    %v323 = vpop.f32.mrb[0].mxu0
    %v324 = vadd.f32 %v250, %v323
    %v325 = vpop.f32.mrb[0].mxu0
    %326 = vdwg.mxu0
    %327 = vmatprep.subr.mxu0 0.0
    %328 = vmatpush1.msra.mxu0 %v181
    %329 = vmatprep.subr.mxu0 0.0
    %330 = vmatpush1.msra.mxu0 %v182
    %331 = vmatprep.subr.mxu0 0.0
    %332 = vmatpush1.msra.mxu0 %v183
    %333 = vmatprep.subr.mxu0 0.0
    %334 = vmatpush1.msra.mxu0 %v184
    %335 = vmatprep.subr.mxu0 0.0
    %336 = vmatpush1.msra.mxu0 %v185
    %337 = vmatprep.subr.mxu0 0.0
    %338 = vmatpush1.msra.mxu0 %v186
    %339 = vmatprep.subr.mxu0 0.0
    %340 = vmatpush1.msra.mxu0 %v187
    %341 = vmatprep.subr.mxu0 0.0
    %342 = vmatpush1.msra.mxu0 %v188
    %343 = vmatprep.subr.mxu0 0.0
    %344 = vmatpush1.msra.mxu0 %v189
    %345 = vmatprep.subr.mxu0 0.0
    %346 = vmatpush1.msra.mxu0 %v190
    %347 = vmatprep.subr.mxu0 0.0
    %348 = vmatpush1.msra.mxu0 %v191
    %349 = vmatprep.subr.mxu0 0.0
    %350 = vmatpush1.msra.mxu0 %v192
    %351 = vmatprep.subr.mxu0 0.0
    %352 = vmatpush1.msra.mxu0 %v193
    %353 = vmatprep.subr.mxu0 0.0
    %354 = vmatpush1.msra.mxu0 %v194
    %355 = vmatprep.subr.mxu0 0.0
    %356 = vmatpush1.msra.mxu0 %v195
    %357 = vmatprep.subr.mxu0 0.0
    %358 = vmatpush1.msra.mxu0 %v196
    %359 = vmatprep.subr.mxu0 0.0
    %360 = vmatpush1.msra.mxu0 %v197
    %361 = vmatprep.subr.mxu0 0.0
    %362 = vmatpush1.msra.mxu0 %v198
    %363 = vmatprep.subr.mxu0 0.0
    %364 = vmatpush1.msra.mxu0 %v199
    %365 = vmatprep.subr.mxu0 0.0
    %366 = vmatpush1.msra.mxu0 %v200
    %367 = vmatprep.subr.mxu0 0.0
    %368 = vmatpush1.msra.mxu0 %v201
    %369 = vmatprep.subr.mxu0 0.0
    %370 = vmatpush1.msra.mxu0 %v202
    %371 = vmatprep.subr.mxu0 0.0
    %372 = vmatpush1.msra.mxu0 %v203
    %373 = vmatprep.subr.mxu0 0.0
    %374 = vmatpush1.msra.mxu0 %v204
    %375 = vmatprep.subr.mxu0 0.0
    %376 = vmatpush1.msra.mxu0 %v205
    %377 = vmatprep.subr.mxu0 0.0
    %378 = vmatpush1.msra.mxu0 %v206
    %379 = vmatprep.subr.mxu0 0.0
    %380 = vmatpush1.msra.mxu0 %v207
    %381 = vmatprep.subr.mxu0 0.0
    %382 = vmatpush1.msra.mxu0 %v208
    %383 = vmatprep.subr.mxu0 0.0
    %384 = vmatpush1.msra.mxu0 %v209
    %385 = vmatprep.subr.mxu0 0.0
    %386 = vmatpush1.msra.mxu0 %v210
    %387 = vmatprep.subr.mxu0 0.0
    %388 = vmatpush1.msra.mxu0 %v211
    %389 = vmatprep.subr.mxu0 0.0
    %390 = vmatpush1.msra.mxu0 %v212
    %391 = vmatprep.mubr.f32.mxu0 %v140
    %392 = vmatmul.mubr.f32.gmra.mrb[0].mxu0 %v139
    %v393 = vpop.f32.mrb[0].mxu0
    %v394 = vadd.f32 %v319, %v393
    %v395 = vpop.f32.mrb[0].mxu0
    %396 = vmatprep.mubr.f32.mxu0 %v146
    %397 = vmatmul.mubr.f32.gmra.mrb[0].mxu0 %v145
    %v398 = vpop.f32.mrb[0].mxu0
    %v399 = vadd.f32 %v324, %v398
    %v400 = vpop.f32.mrb[0].mxu0
    %401 = vdwg.mxu0
    %402 = vmatprep.subr.mxu0 0.0
    %403 = vmatpush1.msra.mxu0 %v213
    %404 = vmatprep.subr.mxu0 0.0
    %405 = vmatpush1.msra.mxu0 %v214
    %406 = vmatprep.subr.mxu0 0.0
    %407 = vmatpush1.msra.mxu0 %v215
    %408 = vmatprep.subr.mxu0 0.0
    %409 = vmatpush1.msra.mxu0 %v216
    %410 = vmatprep.subr.mxu0 0.0
    %411 = vmatpush1.msra.mxu0 %v217
    %412 = vmatprep.subr.mxu0 0.0
    %413 = vmatpush1.msra.mxu0 %v218
    %414 = vmatprep.subr.mxu0 0.0
    %415 = vmatpush1.msra.mxu0 %v219
    %416 = vmatprep.subr.mxu0 0.0
    %417 = vmatpush1.msra.mxu0 %v220
    %418 = vmatprep.subr.mxu0 0.0
    %419 = vmatpush1.msra.mxu0 %v221
    %420 = vmatprep.subr.mxu0 0.0
    %421 = vmatpush1.msra.mxu0 %v222
    %422 = vmatprep.subr.mxu0 0.0
    %423 = vmatpush1.msra.mxu0 %v223
    %424 = vmatprep.subr.mxu0 0.0
    %425 = vmatpush1.msra.mxu0 %v224
    %426 = vmatprep.subr.mxu0 0.0
    %427 = vmatpush1.msra.mxu0 %v225
    %428 = vmatprep.subr.mxu0 0.0
    %429 = vmatpush1.msra.mxu0 %v226
    %430 = vmatprep.subr.mxu0 0.0
    %431 = vmatpush1.msra.mxu0 %v227
    %432 = vmatprep.subr.mxu0 0.0
    %433 = vmatpush1.msra.mxu0 %v228
    %434 = vmatprep.subr.mxu0 0.0
    %435 = vmatpush1.msra.mxu0 %v229
    %436 = vmatprep.subr.mxu0 0.0
    %437 = vmatpush1.msra.mxu0 %v230
    %438 = vmatprep.subr.mxu0 0.0
    %439 = vmatpush1.msra.mxu0 %v231
    %440 = vmatprep.subr.mxu0 0.0
    %441 = vmatpush1.msra.mxu0 %v232
    %442 = vmatprep.subr.mxu0 0.0
    %443 = vmatpush1.msra.mxu0 %v233
    %444 = vmatprep.subr.mxu0 0.0
    %445 = vmatpush1.msra.mxu0 %v234
    %446 = vmatprep.subr.mxu0 0.0
    %447 = vmatpush1.msra.mxu0 %v235
    %448 = vmatprep.subr.mxu0 0.0
    %449 = vmatpush1.msra.mxu0 %v236
    %450 = vmatprep.subr.mxu0 0.0
    %451 = vmatpush1.msra.mxu0 %v237
    %452 = vmatprep.subr.mxu0 0.0
    %453 = vmatpush1.msra.mxu0 %v238
    %454 = vmatprep.subr.mxu0 0.0
    %455 = vmatpush1.msra.mxu0 %v239
    %456 = vmatprep.subr.mxu0 0.0
    %457 = vmatpush1.msra.mxu0 %v240
    %458 = vmatprep.subr.mxu0 0.0
    %459 = vmatpush1.msra.mxu0 %v241
    %460 = vmatprep.subr.mxu0 0.0
    %461 = vmatpush1.msra.mxu0 %v242
    %462 = vmatprep.subr.mxu0 0.0
    %463 = vmatpush1.msra.mxu0 %v243
    %464 = vmatprep.subr.mxu0 0.0
    %465 = vmatpush1.msra.mxu0 %v244
    %466 = vmatprep.mubr.f32.mxu0 %v142
    %467 = vmatmul.mubr.f32.gmra.mrb[0].mxu0 %v141
    %v468 = vpop.f32.mrb[0].mxu0
    %v469 = vadd.f32 %v394, %v468
    %v470 = vpop.f32.mrb[0].mxu0
    %471 = vmatprep.mubr.f32.mxu0 %v148
    %472 = vmatmul.mubr.f32.gmra.mrb[0].mxu0 %v147
    %v473 = vpop.f32.mrb[0].mxu0
    %v474 = vadd.f32 %v399, %v473
    %v475 = vpop.f32.mrb[0].mxu0
    %476 = vdwg.mxu0
    %v477 = vld [vmem:[#allocation5] sm:$0xff]
    %v478 = vld [vmem:[#allocation5 + $0x8] sm:$0xff]
    %v479 = vld [vmem:[#allocation5 + $0x10] sm:$0xff]
    %v480 = vld [vmem:[#allocation5 + $0x18] sm:$0xff]
    %v481 = vld [vmem:[#allocation5 + $0x20] sm:$0xff]
    %v482 = vld [vmem:[#allocation5 + $0x28] sm:$0xff]
    %v483 = vld [vmem:[#allocation5 + $0x30] sm:$0xff]
    %v484 = vld [vmem:[#allocation5 + $0x38] sm:$0xff]
    %v485 = vld [vmem:[#allocation5 + $0x40] sm:$0xff]
    %v486 = vld [vmem:[#allocation5 + $0x48] sm:$0xff]
    %v487 = vld [vmem:[#allocation5 + $0x50] sm:$0xff]
    %v488 = vld [vmem:[#allocation5 + $0x58] sm:$0xff]
    %s489 = scalar_lea.vmem [#allocation10], 768
    %v490 = vld [vmem:[%s489] sm:$0xff]
    %v491 = vld [vmem:[%s489 + $0x8] sm:$0xff]
    %v492 = vld [vmem:[%s489 + $0x10] sm:$0xff]
    %v493 = vld [vmem:[%s489 + $0x18] sm:$0xff]
    %v494 = vld [vmem:[%s489 + $0x20] sm:$0xff]
    %v495 = vld [vmem:[%s489 + $0x28] sm:$0xff]
    %v496 = vld [vmem:[%s489 + $0x30] sm:$0xff]
    %v497 = vld [vmem:[%s489 + $0x38] sm:$0xff]
    %v498 = vld [vmem:[%s489 + $0x40] sm:$0xff]
    %v499 = vld [vmem:[%s489 + $0x48] sm:$0xff]
    %v500 = vld [vmem:[%s489 + $0x50] sm:$0xff]
    %v501 = vld [vmem:[%s489 + $0x58] sm:$0xff]
    %v502 = vld [vmem:[%s489 + $0x60] sm:$0xff]
    %v503 = vld [vmem:[%s489 + $0x68] sm:$0xff]
    %v504 = vld [vmem:[%s489 + $0x70] sm:$0xff]
    %v505 = vld [vmem:[%s489 + $0x78] sm:$0xff]
    %v506 = vld [vmem:[%s489 + $0x80] sm:$0xff]
    %v507 = vld [vmem:[%s489 + $0x88] sm:$0xff]
    %v508 = vld [vmem:[%s489 + $0x90] sm:$0xff]
    %v509 = vld [vmem:[%s489 + $0x98] sm:$0xff]
    %v510 = vld [vmem:[%s489 + $0xa0] sm:$0xff]
    %v511 = vld [vmem:[%s489 + $0xa8] sm:$0xff]
    %v512 = vld [vmem:[%s489 + $0xb0] sm:$0xff]
    %v513 = vld [vmem:[%s489 + $0xb8] sm:$0xff]
    %v514 = vld [vmem:[%s489 + $0xc0] sm:$0xff]
    %v515 = vld [vmem:[%s489 + $0xc8] sm:$0xff]
    %v516 = vld [vmem:[%s489 + $0xd0] sm:$0xff]
    %v517 = vld [vmem:[%s489 + $0xd8] sm:$0xff]
    %v518 = vld [vmem:[%s489 + $0xe0] sm:$0xff]
    %v519 = vld [vmem:[%s489 + $0xe8] sm:$0xff]
    %v520 = vld [vmem:[%s489 + $0xf0] sm:$0xff]
    %v521 = vld [vmem:[%s489 + $0xf8] sm:$0xff]
    %v522 = vld [vmem:[%s489 + $0x100] sm:$0xff]
    %v523 = vld [vmem:[%s489 + $0x108] sm:$0xff]
    %v524 = vld [vmem:[%s489 + $0x110] sm:$0xff]
    %v525 = vld [vmem:[%s489 + $0x118] sm:$0xff]
    %v526 = vld [vmem:[%s489 + $0x120] sm:$0xff]
    %v527 = vld [vmem:[%s489 + $0x128] sm:$0xff]
    %v528 = vld [vmem:[%s489 + $0x130] sm:$0xff]
    %v529 = vld [vmem:[%s489 + $0x138] sm:$0xff]
    %v530 = vld [vmem:[%s489 + $0x140] sm:$0xff]
    %v531 = vld [vmem:[%s489 + $0x148] sm:$0xff]
    %v532 = vld [vmem:[%s489 + $0x150] sm:$0xff]
    %v533 = vld [vmem:[%s489 + $0x158] sm:$0xff]
    %v534 = vld [vmem:[%s489 + $0x160] sm:$0xff]
    %v535 = vld [vmem:[%s489 + $0x168] sm:$0xff]
    %v536 = vld [vmem:[%s489 + $0x170] sm:$0xff]
    %v537 = vld [vmem:[%s489 + $0x178] sm:$0xff]
    %v538 = vld [vmem:[%s489 + $0x180] sm:$0xff]
    %v539 = vld [vmem:[%s489 + $0x188] sm:$0xff]
    %v540 = vld [vmem:[%s489 + $0x190] sm:$0xff]
    %v541 = vld [vmem:[%s489 + $0x198] sm:$0xff]
    %v542 = vld [vmem:[%s489 + $0x1a0] sm:$0xff]
    %v543 = vld [vmem:[%s489 + $0x1a8] sm:$0xff]
    %v544 = vld [vmem:[%s489 + $0x1b0] sm:$0xff]
    %v545 = vld [vmem:[%s489 + $0x1b8] sm:$0xff]
    %v546 = vld [vmem:[%s489 + $0x1c0] sm:$0xff]
    %v547 = vld [vmem:[%s489 + $0x1c8] sm:$0xff]
    %v548 = vld [vmem:[%s489 + $0x1d0] sm:$0xff]
    %v549 = vld [vmem:[%s489 + $0x1d8] sm:$0xff]
    %v550 = vld [vmem:[%s489 + $0x1e0] sm:$0xff]
    %v551 = vld [vmem:[%s489 + $0x1e8] sm:$0xff]
    %v552 = vld [vmem:[%s489 + $0x1f0] sm:$0xff]
    %v553 = vld [vmem:[%s489 + $0x1f8] sm:$0xff]
    %v554 = vld [vmem:[%s489 + $0x200] sm:$0xff]
    %v555 = vld [vmem:[%s489 + $0x208] sm:$0xff]
    %v556 = vld [vmem:[%s489 + $0x210] sm:$0xff]
    %v557 = vld [vmem:[%s489 + $0x218] sm:$0xff]
    %v558 = vld [vmem:[%s489 + $0x220] sm:$0xff]
    %v559 = vld [vmem:[%s489 + $0x228] sm:$0xff]
    %v560 = vld [vmem:[%s489 + $0x230] sm:$0xff]
    %v561 = vld [vmem:[%s489 + $0x238] sm:$0xff]
    %v562 = vld [vmem:[%s489 + $0x240] sm:$0xff]
    %v563 = vld [vmem:[%s489 + $0x248] sm:$0xff]
    %v564 = vld [vmem:[%s489 + $0x250] sm:$0xff]
    %v565 = vld [vmem:[%s489 + $0x258] sm:$0xff]
    %v566 = vld [vmem:[%s489 + $0x260] sm:$0xff]
    %v567 = vld [vmem:[%s489 + $0x268] sm:$0xff]
    %v568 = vld [vmem:[%s489 + $0x270] sm:$0xff]
    %v569 = vld [vmem:[%s489 + $0x278] sm:$0xff]
    %v570 = vld [vmem:[%s489 + $0x280] sm:$0xff]
    %v571 = vld [vmem:[%s489 + $0x288] sm:$0xff]
    %v572 = vld [vmem:[%s489 + $0x290] sm:$0xff]
    %v573 = vld [vmem:[%s489 + $0x298] sm:$0xff]
    %v574 = vld [vmem:[%s489 + $0x2a0] sm:$0xff]
    %v575 = vld [vmem:[%s489 + $0x2a8] sm:$0xff]
    %v576 = vld [vmem:[%s489 + $0x2b0] sm:$0xff]
    %v577 = vld [vmem:[%s489 + $0x2b8] sm:$0xff]
    %v578 = vld [vmem:[%s489 + $0x2c0] sm:$0xff]
    %v579 = vld [vmem:[%s489 + $0x2c8] sm:$0xff]
    %v580 = vld [vmem:[%s489 + $0x2d0] sm:$0xff]
    %v581 = vld [vmem:[%s489 + $0x2d8] sm:$0xff]
    %v582 = vld [vmem:[%s489 + $0x2e0] sm:$0xff]
    %v583 = vld [vmem:[%s489 + $0x2e8] sm:$0xff]
    %v584 = vld [vmem:[%s489 + $0x2f0] sm:$0xff]
    %v585 = vld [vmem:[%s489 + $0x2f8] sm:$0xff]
    %s586 = scalar_lea.vmem [#allocation11], 1
    %v587 = vld [vmem:[%s586] sm:$0x1]
    %v589 = vlaneseq
    %v590 = vshrl.u32 %v589, 7
    %v591 = vsub.s32 0, %v590
    %v592 = vrot.slane %v587, %v591
    %594 = vmatprep.subr.mxu0 0.0
    %595 = vmatpush1.msra.mxu0 %v490
    %596 = vmatprep.subr.mxu0 0.0
    %597 = vmatpush1.msra.mxu0 %v491
    %598 = vmatprep.subr.mxu0 0.0
    %599 = vmatpush1.msra.mxu0 %v492
    %600 = vmatprep.subr.mxu0 0.0
    %601 = vmatpush1.msra.mxu0 %v493
    %602 = vmatprep.subr.mxu0 0.0
    %603 = vmatpush1.msra.mxu0 %v494
    %604 = vmatprep.subr.mxu0 0.0
    %605 = vmatpush1.msra.mxu0 %v495
    %606 = vmatprep.subr.mxu0 0.0
    %607 = vmatpush1.msra.mxu0 %v496
    %608 = vmatprep.subr.mxu0 0.0
    %609 = vmatpush1.msra.mxu0 %v497
    %610 = vmatprep.subr.mxu0 0.0
    %611 = vmatpush1.msra.mxu0 %v498
    %612 = vmatprep.subr.mxu0 0.0
    %613 = vmatpush1.msra.mxu0 %v499
    %614 = vmatprep.subr.mxu0 0.0
    %615 = vmatpush1.msra.mxu0 %v500
    %616 = vmatprep.subr.mxu0 0.0
    %617 = vmatpush1.msra.mxu0 %v501
    %618 = vmatprep.subr.mxu0 0.0
    %619 = vmatpush1.msra.mxu0 %v502
    %620 = vmatprep.subr.mxu0 0.0
    %621 = vmatpush1.msra.mxu0 %v503
    %622 = vmatprep.subr.mxu0 0.0
    %623 = vmatpush1.msra.mxu0 %v504
    %624 = vmatprep.subr.mxu0 0.0
    %625 = vmatpush1.msra.mxu0 %v505
    %626 = vmatprep.subr.mxu0 0.0
    %627 = vmatpush1.msra.mxu0 %v506
    %628 = vmatprep.subr.mxu0 0.0
    %629 = vmatpush1.msra.mxu0 %v507
    %630 = vmatprep.subr.mxu0 0.0
    %631 = vmatpush1.msra.mxu0 %v508
    %632 = vmatprep.subr.mxu0 0.0
    %633 = vmatpush1.msra.mxu0 %v509
    %634 = vmatprep.subr.mxu0 0.0
    %635 = vmatpush1.msra.mxu0 %v510
    %636 = vmatprep.subr.mxu0 0.0
    %637 = vmatpush1.msra.mxu0 %v511
    %638 = vmatprep.subr.mxu0 0.0
    %639 = vmatpush1.msra.mxu0 %v512
    %640 = vmatprep.subr.mxu0 0.0
    %641 = vmatpush1.msra.mxu0 %v513
    %642 = vmatprep.subr.mxu0 0.0
    %643 = vmatpush1.msra.mxu0 %v514
    %644 = vmatprep.subr.mxu0 0.0
    %645 = vmatpush1.msra.mxu0 %v515
    %646 = vmatprep.subr.mxu0 0.0
    %647 = vmatpush1.msra.mxu0 %v516
    %648 = vmatprep.subr.mxu0 0.0
    %649 = vmatpush1.msra.mxu0 %v517
    %650 = vmatprep.subr.mxu0 0.0
    %651 = vmatpush1.msra.mxu0 %v518
    %652 = vmatprep.subr.mxu0 0.0
    %653 = vmatpush1.msra.mxu0 %v519
    %654 = vmatprep.subr.mxu0 0.0
    %655 = vmatpush1.msra.mxu0 %v520
    %656 = vmatprep.subr.mxu0 0.0
    %657 = vmatpush1.msra.mxu0 %v521
    %658 = vmatprep.mubr.f32.mxu0 %v478
    %659 = vmatmul.mubr.f32.gmra.mrb[0].mxu0 %v477
    %v660 = vpop.f32.mrb[0].mxu0
    %v661 = vadd.f32 %v592, %v660
    %v662 = vpop.f32.mrb[0].mxu0
    %663 = vmatprep.mubr.f32.mxu0 %v484
    %664 = vmatmul.mubr.f32.gmra.mrb[0].mxu0 %v483
    %v665 = vpop.f32.mrb[0].mxu0
    %v666 = vadd.f32 %v592, %v665
    %v667 = vpop.f32.mrb[0].mxu0
    %668 = vdwg.mxu0
    %669 = vmatprep.subr.mxu0 0.0
    %670 = vmatpush1.msra.mxu0 %v522
    %671 = vmatprep.subr.mxu0 0.0
    %672 = vmatpush1.msra.mxu0 %v523
    %673 = vmatprep.subr.mxu0 0.0
    %674 = vmatpush1.msra.mxu0 %v524
    %675 = vmatprep.subr.mxu0 0.0
    %676 = vmatpush1.msra.mxu0 %v525
    %677 = vmatprep.subr.mxu0 0.0
    %678 = vmatpush1.msra.mxu0 %v526
    %679 = vmatprep.subr.mxu0 0.0
    %680 = vmatpush1.msra.mxu0 %v527
    %681 = vmatprep.subr.mxu0 0.0
    %682 = vmatpush1.msra.mxu0 %v528
    %683 = vmatprep.subr.mxu0 0.0
    %684 = vmatpush1.msra.mxu0 %v529
    %685 = vmatprep.subr.mxu0 0.0
    %686 = vmatpush1.msra.mxu0 %v530
    %687 = vmatprep.subr.mxu0 0.0
    %688 = vmatpush1.msra.mxu0 %v531
    %689 = vmatprep.subr.mxu0 0.0
    %690 = vmatpush1.msra.mxu0 %v532
    %691 = vmatprep.subr.mxu0 0.0
    %692 = vmatpush1.msra.mxu0 %v533
    %693 = vmatprep.subr.mxu0 0.0
    %694 = vmatpush1.msra.mxu0 %v534
    %695 = vmatprep.subr.mxu0 0.0
    %696 = vmatpush1.msra.mxu0 %v535
    %697 = vmatprep.subr.mxu0 0.0
    %698 = vmatpush1.msra.mxu0 %v536
    %699 = vmatprep.subr.mxu0 0.0
    %700 = vmatpush1.msra.mxu0 %v537
    %701 = vmatprep.subr.mxu0 0.0
    %702 = vmatpush1.msra.mxu0 %v538
    %703 = vmatprep.subr.mxu0 0.0
    %704 = vmatpush1.msra.mxu0 %v539
    %705 = vmatprep.subr.mxu0 0.0
    %706 = vmatpush1.msra.mxu0 %v540
    %707 = vmatprep.subr.mxu0 0.0
    %708 = vmatpush1.msra.mxu0 %v541
    %709 = vmatprep.subr.mxu0 0.0
    %710 = vmatpush1.msra.mxu0 %v542
    %711 = vmatprep.subr.mxu0 0.0
    %712 = vmatpush1.msra.mxu0 %v543
    %713 = vmatprep.subr.mxu0 0.0
    %714 = vmatpush1.msra.mxu0 %v544
    %715 = vmatprep.subr.mxu0 0.0
    %716 = vmatpush1.msra.mxu0 %v545
    %717 = vmatprep.subr.mxu0 0.0
    %718 = vmatpush1.msra.mxu0 %v546
    %719 = vmatprep.subr.mxu0 0.0
    %720 = vmatpush1.msra.mxu0 %v547
    %721 = vmatprep.subr.mxu0 0.0
    %722 = vmatpush1.msra.mxu0 %v548
    %723 = vmatprep.subr.mxu0 0.0
    %724 = vmatpush1.msra.mxu0 %v549
    %725 = vmatprep.subr.mxu0 0.0
    %726 = vmatpush1.msra.mxu0 %v550
    %727 = vmatprep.subr.mxu0 0.0
    %728 = vmatpush1.msra.mxu0 %v551
    %729 = vmatprep.subr.mxu0 0.0
    %730 = vmatpush1.msra.mxu0 %v552
    %731 = vmatprep.subr.mxu0 0.0
    %732 = vmatpush1.msra.mxu0 %v553
    %733 = vmatprep.mubr.f32.mxu0 %v480
    %734 = vmatmul.mubr.f32.gmra.mrb[0].mxu0 %v479
    %v735 = vpop.f32.mrb[0].mxu0
    %v736 = vadd.f32 %v661, %v735
    %v737 = vpop.f32.mrb[0].mxu0
    %738 = vmatprep.mubr.f32.mxu0 %v486
    %739 = vmatmul.mubr.f32.gmra.mrb[0].mxu0 %v485
    %v740 = vpop.f32.mrb[0].mxu0
    %v741 = vadd.f32 %v666, %v740
    %v742 = vpop.f32.mrb[0].mxu0
    %743 = vdwg.mxu0
    %744 = vmatprep.subr.mxu0 0.0
    %745 = vmatpush1.msra.mxu0 %v554
    %746 = vmatprep.subr.mxu0 0.0
    %747 = vmatpush1.msra.mxu0 %v555
    %748 = vmatprep.subr.mxu0 0.0
    %749 = vmatpush1.msra.mxu0 %v556
    %750 = vmatprep.subr.mxu0 0.0
    %751 = vmatpush1.msra.mxu0 %v557
    %752 = vmatprep.subr.mxu0 0.0
    %753 = vmatpush1.msra.mxu0 %v558
    %754 = vmatprep.subr.mxu0 0.0
    %755 = vmatpush1.msra.mxu0 %v559
    %756 = vmatprep.subr.mxu0 0.0
    %757 = vmatpush1.msra.mxu0 %v560
    %758 = vmatprep.subr.mxu0 0.0
    %759 = vmatpush1.msra.mxu0 %v561
    %760 = vmatprep.subr.mxu0 0.0
    %761 = vmatpush1.msra.mxu0 %v562
    %762 = vmatprep.subr.mxu0 0.0
    %763 = vmatpush1.msra.mxu0 %v563
    %764 = vmatprep.subr.mxu0 0.0
    %765 = vmatpush1.msra.mxu0 %v564
    %766 = vmatprep.subr.mxu0 0.0
    %767 = vmatpush1.msra.mxu0 %v565
    %768 = vmatprep.subr.mxu0 0.0
    %769 = vmatpush1.msra.mxu0 %v566
    %770 = vmatprep.subr.mxu0 0.0
    %771 = vmatpush1.msra.mxu0 %v567
    %772 = vmatprep.subr.mxu0 0.0
    %773 = vmatpush1.msra.mxu0 %v568
    %774 = vmatprep.subr.mxu0 0.0
    %775 = vmatpush1.msra.mxu0 %v569
    %776 = vmatprep.subr.mxu0 0.0
    %777 = vmatpush1.msra.mxu0 %v570
    %778 = vmatprep.subr.mxu0 0.0
    %779 = vmatpush1.msra.mxu0 %v571
    %780 = vmatprep.subr.mxu0 0.0
    %781 = vmatpush1.msra.mxu0 %v572
    %782 = vmatprep.subr.mxu0 0.0
    %783 = vmatpush1.msra.mxu0 %v573
    %784 = vmatprep.subr.mxu0 0.0
    %785 = vmatpush1.msra.mxu0 %v574
    %786 = vmatprep.subr.mxu0 0.0
    %787 = vmatpush1.msra.mxu0 %v575
    %788 = vmatprep.subr.mxu0 0.0
    %789 = vmatpush1.msra.mxu0 %v576
    %790 = vmatprep.subr.mxu0 0.0
    %791 = vmatpush1.msra.mxu0 %v577
    %792 = vmatprep.subr.mxu0 0.0
    %793 = vmatpush1.msra.mxu0 %v578
    %794 = vmatprep.subr.mxu0 0.0
    %795 = vmatpush1.msra.mxu0 %v579
    %796 = vmatprep.subr.mxu0 0.0
    %797 = vmatpush1.msra.mxu0 %v580
    %798 = vmatprep.subr.mxu0 0.0
    %799 = vmatpush1.msra.mxu0 %v581
    %800 = vmatprep.subr.mxu0 0.0
    %801 = vmatpush1.msra.mxu0 %v582
    %802 = vmatprep.subr.mxu0 0.0
    %803 = vmatpush1.msra.mxu0 %v583
    %804 = vmatprep.subr.mxu0 0.0
    %805 = vmatpush1.msra.mxu0 %v584
    %806 = vmatprep.subr.mxu0 0.0
    %807 = vmatpush1.msra.mxu0 %v585
    %808 = vmatprep.mubr.f32.mxu0 %v482
    %809 = vmatmul.mubr.f32.gmra.mrb[0].mxu0 %v481
    %v810 = vpop.f32.mrb[0].mxu0
    %v811 = vadd.f32 %v736, %v810
    %v812 = vpop.f32.mrb[0].mxu0
    %813 = vmatprep.mubr.f32.mxu0 %v488
    %814 = vmatmul.mubr.f32.gmra.mrb[0].mxu0 %v487
    %v815 = vpop.f32.mrb[0].mxu0
    %v816 = vadd.f32 %v741, %v815
    %v817 = vpop.f32.mrb[0].mxu0
    %818 = vdwg.mxu0
    %v819 = vmul.f32 %v469, %v811
    %v820 = vmul.f32 %v474, %v816
    %v821 = vld [vmem:[#allocation7] sm:$0xff]
    %v822 = vld [vmem:[#allocation7 + $0x8] sm:$0xff]
    %v823 = vld [vmem:[#allocation7 + $0x10] sm:$0xff]
    %v824 = vld [vmem:[#allocation7 + $0x18] sm:$0xff]
    %v825 = vld [vmem:[#allocation7 + $0x20] sm:$0xff]
    %v826 = vld [vmem:[#allocation7 + $0x28] sm:$0xff]
    %v827 = vld [vmem:[#allocation7 + $0x30] sm:$0xff]
    %v828 = vld [vmem:[#allocation7 + $0x38] sm:$0xff]
    %v829 = vld [vmem:[#allocation7 + $0x40] sm:$0xff]
    %v830 = vld [vmem:[#allocation7 + $0x48] sm:$0xff]
    %v831 = vld [vmem:[#allocation7 + $0x50] sm:$0xff]
    %v832 = vld [vmem:[#allocation7 + $0x58] sm:$0xff]
    %s833 = scalar_lea.vmem [#allocation10], 1536
    %v834 = vld [vmem:[%s833] sm:$0xff]
    %v835 = vld [vmem:[%s833 + $0x8] sm:$0xff]
    %v836 = vld [vmem:[%s833 + $0x10] sm:$0xff]
    %v837 = vld [vmem:[%s833 + $0x18] sm:$0xff]
    %v838 = vld [vmem:[%s833 + $0x20] sm:$0xff]
    %v839 = vld [vmem:[%s833 + $0x28] sm:$0xff]
    %v840 = vld [vmem:[%s833 + $0x30] sm:$0xff]
    %v841 = vld [vmem:[%s833 + $0x38] sm:$0xff]
    %v842 = vld [vmem:[%s833 + $0x40] sm:$0xff]
    %v843 = vld [vmem:[%s833 + $0x48] sm:$0xff]
    %v844 = vld [vmem:[%s833 + $0x50] sm:$0xff]
    %v845 = vld [vmem:[%s833 + $0x58] sm:$0xff]
    %v846 = vld [vmem:[%s833 + $0x60] sm:$0xff]
    %v847 = vld [vmem:[%s833 + $0x68] sm:$0xff]
    %v848 = vld [vmem:[%s833 + $0x70] sm:$0xff]
    %v849 = vld [vmem:[%s833 + $0x78] sm:$0xff]
    %v850 = vld [vmem:[%s833 + $0x80] sm:$0xff]
    %v851 = vld [vmem:[%s833 + $0x88] sm:$0xff]
    %v852 = vld [vmem:[%s833 + $0x90] sm:$0xff]
    %v853 = vld [vmem:[%s833 + $0x98] sm:$0xff]
    %v854 = vld [vmem:[%s833 + $0xa0] sm:$0xff]
    %v855 = vld [vmem:[%s833 + $0xa8] sm:$0xff]
    %v856 = vld [vmem:[%s833 + $0xb0] sm:$0xff]
    %v857 = vld [vmem:[%s833 + $0xb8] sm:$0xff]
    %v858 = vld [vmem:[%s833 + $0xc0] sm:$0xff]
    %v859 = vld [vmem:[%s833 + $0xc8] sm:$0xff]
    %v860 = vld [vmem:[%s833 + $0xd0] sm:$0xff]
    %v861 = vld [vmem:[%s833 + $0xd8] sm:$0xff]
    %v862 = vld [vmem:[%s833 + $0xe0] sm:$0xff]
    %v863 = vld [vmem:[%s833 + $0xe8] sm:$0xff]
    %v864 = vld [vmem:[%s833 + $0xf0] sm:$0xff]
    %v865 = vld [vmem:[%s833 + $0xf8] sm:$0xff]
    %v866 = vld [vmem:[%s833 + $0x100] sm:$0xff]
    %v867 = vld [vmem:[%s833 + $0x108] sm:$0xff]
    %v868 = vld [vmem:[%s833 + $0x110] sm:$0xff]
    %v869 = vld [vmem:[%s833 + $0x118] sm:$0xff]
    %v870 = vld [vmem:[%s833 + $0x120] sm:$0xff]
    %v871 = vld [vmem:[%s833 + $0x128] sm:$0xff]
    %v872 = vld [vmem:[%s833 + $0x130] sm:$0xff]
    %v873 = vld [vmem:[%s833 + $0x138] sm:$0xff]
    %v874 = vld [vmem:[%s833 + $0x140] sm:$0xff]
    %v875 = vld [vmem:[%s833 + $0x148] sm:$0xff]
    %v876 = vld [vmem:[%s833 + $0x150] sm:$0xff]
    %v877 = vld [vmem:[%s833 + $0x158] sm:$0xff]
    %v878 = vld [vmem:[%s833 + $0x160] sm:$0xff]
    %v879 = vld [vmem:[%s833 + $0x168] sm:$0xff]
    %v880 = vld [vmem:[%s833 + $0x170] sm:$0xff]
    %v881 = vld [vmem:[%s833 + $0x178] sm:$0xff]
    %v882 = vld [vmem:[%s833 + $0x180] sm:$0xff]
    %v883 = vld [vmem:[%s833 + $0x188] sm:$0xff]
    %v884 = vld [vmem:[%s833 + $0x190] sm:$0xff]
    %v885 = vld [vmem:[%s833 + $0x198] sm:$0xff]
    %v886 = vld [vmem:[%s833 + $0x1a0] sm:$0xff]
    %v887 = vld [vmem:[%s833 + $0x1a8] sm:$0xff]
    %v888 = vld [vmem:[%s833 + $0x1b0] sm:$0xff]
    %v889 = vld [vmem:[%s833 + $0x1b8] sm:$0xff]
    %v890 = vld [vmem:[%s833 + $0x1c0] sm:$0xff]
    %v891 = vld [vmem:[%s833 + $0x1c8] sm:$0xff]
    %v892 = vld [vmem:[%s833 + $0x1d0] sm:$0xff]
    %v893 = vld [vmem:[%s833 + $0x1d8] sm:$0xff]
    %v894 = vld [vmem:[%s833 + $0x1e0] sm:$0xff]
    %v895 = vld [vmem:[%s833 + $0x1e8] sm:$0xff]
    %v896 = vld [vmem:[%s833 + $0x1f0] sm:$0xff]
    %v897 = vld [vmem:[%s833 + $0x1f8] sm:$0xff]
    %v898 = vld [vmem:[%s833 + $0x200] sm:$0xff]
    %v899 = vld [vmem:[%s833 + $0x208] sm:$0xff]
    %v900 = vld [vmem:[%s833 + $0x210] sm:$0xff]
    %v901 = vld [vmem:[%s833 + $0x218] sm:$0xff]
    %v902 = vld [vmem:[%s833 + $0x220] sm:$0xff]
    %v903 = vld [vmem:[%s833 + $0x228] sm:$0xff]
    %v904 = vld [vmem:[%s833 + $0x230] sm:$0xff]
    %v905 = vld [vmem:[%s833 + $0x238] sm:$0xff]
    %v906 = vld [vmem:[%s833 + $0x240] sm:$0xff]
    %v907 = vld [vmem:[%s833 + $0x248] sm:$0xff]
    %v908 = vld [vmem:[%s833 + $0x250] sm:$0xff]
    %v909 = vld [vmem:[%s833 + $0x258] sm:$0xff]
    %v910 = vld [vmem:[%s833 + $0x260] sm:$0xff]
    %v911 = vld [vmem:[%s833 + $0x268] sm:$0xff]
    %v912 = vld [vmem:[%s833 + $0x270] sm:$0xff]
    %v913 = vld [vmem:[%s833 + $0x278] sm:$0xff]
    %v914 = vld [vmem:[%s833 + $0x280] sm:$0xff]
    %v915 = vld [vmem:[%s833 + $0x288] sm:$0xff]
    %v916 = vld [vmem:[%s833 + $0x290] sm:$0xff]
    %v917 = vld [vmem:[%s833 + $0x298] sm:$0xff]
    %v918 = vld [vmem:[%s833 + $0x2a0] sm:$0xff]
    %v919 = vld [vmem:[%s833 + $0x2a8] sm:$0xff]
    %v920 = vld [vmem:[%s833 + $0x2b0] sm:$0xff]
    %v921 = vld [vmem:[%s833 + $0x2b8] sm:$0xff]
    %v922 = vld [vmem:[%s833 + $0x2c0] sm:$0xff]
    %v923 = vld [vmem:[%s833 + $0x2c8] sm:$0xff]
    %v924 = vld [vmem:[%s833 + $0x2d0] sm:$0xff]
    %v925 = vld [vmem:[%s833 + $0x2d8] sm:$0xff]
    %v926 = vld [vmem:[%s833 + $0x2e0] sm:$0xff]
    %v927 = vld [vmem:[%s833 + $0x2e8] sm:$0xff]
    %v928 = vld [vmem:[%s833 + $0x2f0] sm:$0xff]
    %v929 = vld [vmem:[%s833 + $0x2f8] sm:$0xff]
    %s930 = scalar_lea.vmem [#allocation11], 2
    %v931 = vld [vmem:[%s930] sm:$0x1]
    %v933 = vlaneseq
    %v934 = vshrl.u32 %v933, 7
    %v935 = vsub.s32 0, %v934
    %v936 = vrot.slane %v931, %v935
    %938 = vmatprep.subr.mxu0 0.0
    %939 = vmatpush1.msra.mxu0 %v834
    %940 = vmatprep.subr.mxu0 0.0
    %941 = vmatpush1.msra.mxu0 %v835
    %942 = vmatprep.subr.mxu0 0.0
    %943 = vmatpush1.msra.mxu0 %v836
    %944 = vmatprep.subr.mxu0 0.0
    %945 = vmatpush1.msra.mxu0 %v837
    %946 = vmatprep.subr.mxu0 0.0
    %947 = vmatpush1.msra.mxu0 %v838
    %948 = vmatprep.subr.mxu0 0.0
    %949 = vmatpush1.msra.mxu0 %v839
    %950 = vmatprep.subr.mxu0 0.0
    %951 = vmatpush1.msra.mxu0 %v840
    %952 = vmatprep.subr.mxu0 0.0
    %953 = vmatpush1.msra.mxu0 %v841
    %954 = vmatprep.subr.mxu0 0.0
    %955 = vmatpush1.msra.mxu0 %v842
    %956 = vmatprep.subr.mxu0 0.0
    %957 = vmatpush1.msra.mxu0 %v843
    %958 = vmatprep.subr.mxu0 0.0
    %959 = vmatpush1.msra.mxu0 %v844
    %960 = vmatprep.subr.mxu0 0.0
    %961 = vmatpush1.msra.mxu0 %v845
    %962 = vmatprep.subr.mxu0 0.0
    %963 = vmatpush1.msra.mxu0 %v846
    %964 = vmatprep.subr.mxu0 0.0
    %965 = vmatpush1.msra.mxu0 %v847
    %966 = vmatprep.subr.mxu0 0.0
    %967 = vmatpush1.msra.mxu0 %v848
    %968 = vmatprep.subr.mxu0 0.0
    %969 = vmatpush1.msra.mxu0 %v849
    %970 = vmatprep.subr.mxu0 0.0
    %971 = vmatpush1.msra.mxu0 %v850
    %972 = vmatprep.subr.mxu0 0.0
    %973 = vmatpush1.msra.mxu0 %v851
    %974 = vmatprep.subr.mxu0 0.0
    %975 = vmatpush1.msra.mxu0 %v852
    %976 = vmatprep.subr.mxu0 0.0
    %977 = vmatpush1.msra.mxu0 %v853
    %978 = vmatprep.subr.mxu0 0.0
    %979 = vmatpush1.msra.mxu0 %v854
    %980 = vmatprep.subr.mxu0 0.0
    %981 = vmatpush1.msra.mxu0 %v855
    %982 = vmatprep.subr.mxu0 0.0
    %983 = vmatpush1.msra.mxu0 %v856
    %984 = vmatprep.subr.mxu0 0.0
    %985 = vmatpush1.msra.mxu0 %v857
    %986 = vmatprep.subr.mxu0 0.0
    %987 = vmatpush1.msra.mxu0 %v858
    %988 = vmatprep.subr.mxu0 0.0
    %989 = vmatpush1.msra.mxu0 %v859
    %990 = vmatprep.subr.mxu0 0.0
    %991 = vmatpush1.msra.mxu0 %v860
    %992 = vmatprep.subr.mxu0 0.0
    %993 = vmatpush1.msra.mxu0 %v861
    %994 = vmatprep.subr.mxu0 0.0
    %995 = vmatpush1.msra.mxu0 %v862
    %996 = vmatprep.subr.mxu0 0.0
    %997 = vmatpush1.msra.mxu0 %v863
    %998 = vmatprep.subr.mxu0 0.0
    %999 = vmatpush1.msra.mxu0 %v864
    %1000 = vmatprep.subr.mxu0 0.0
    %1001 = vmatpush1.msra.mxu0 %v865
    %1002 = vmatprep.mubr.f32.mxu0 %v822
    %1003 = vmatmul.mubr.f32.gmra.mrb[0].mxu0 %v821
    %v1004 = vpop.f32.mrb[0].mxu0
    %v1005 = vadd.f32 %v936, %v1004
    %v1006 = vpop.f32.mrb[0].mxu0
    %1007 = vmatprep.mubr.f32.mxu0 %v828
    %1008 = vmatmul.mubr.f32.gmra.mrb[0].mxu0 %v827
    %v1009 = vpop.f32.mrb[0].mxu0
    %v1010 = vadd.f32 %v936, %v1009
    %v1011 = vpop.f32.mrb[0].mxu0
    %1012 = vdwg.mxu0
    %1013 = vmatprep.subr.mxu0 0.0
    %1014 = vmatpush1.msra.mxu0 %v866
    %1015 = vmatprep.subr.mxu0 0.0
    %1016 = vmatpush1.msra.mxu0 %v867
    %1017 = vmatprep.subr.mxu0 0.0
    %1018 = vmatpush1.msra.mxu0 %v868
    %1019 = vmatprep.subr.mxu0 0.0
    %1020 = vmatpush1.msra.mxu0 %v869
    %1021 = vmatprep.subr.mxu0 0.0
    %1022 = vmatpush1.msra.mxu0 %v870
    %1023 = vmatprep.subr.mxu0 0.0
    %1024 = vmatpush1.msra.mxu0 %v871
    %1025 = vmatprep.subr.mxu0 0.0
    %1026 = vmatpush1.msra.mxu0 %v872
    %1027 = vmatprep.subr.mxu0 0.0
    %1028 = vmatpush1.msra.mxu0 %v873
    %1029 = vmatprep.subr.mxu0 0.0
    %1030 = vmatpush1.msra.mxu0 %v874
    %1031 = vmatprep.subr.mxu0 0.0
    %1032 = vmatpush1.msra.mxu0 %v875
    %1033 = vmatprep.subr.mxu0 0.0
    %1034 = vmatpush1.msra.mxu0 %v876
    %1035 = vmatprep.subr.mxu0 0.0
    %1036 = vmatpush1.msra.mxu0 %v877
    %1037 = vmatprep.subr.mxu0 0.0
    %1038 = vmatpush1.msra.mxu0 %v878
    %1039 = vmatprep.subr.mxu0 0.0
    %1040 = vmatpush1.msra.mxu0 %v879
    %1041 = vmatprep.subr.mxu0 0.0
    %1042 = vmatpush1.msra.mxu0 %v880
    %1043 = vmatprep.subr.mxu0 0.0
    %1044 = vmatpush1.msra.mxu0 %v881
    %1045 = vmatprep.subr.mxu0 0.0
    %1046 = vmatpush1.msra.mxu0 %v882
    %1047 = vmatprep.subr.mxu0 0.0
    %1048 = vmatpush1.msra.mxu0 %v883
    %1049 = vmatprep.subr.mxu0 0.0
    %1050 = vmatpush1.msra.mxu0 %v884
    %1051 = vmatprep.subr.mxu0 0.0
    %1052 = vmatpush1.msra.mxu0 %v885
    %1053 = vmatprep.subr.mxu0 0.0
    %1054 = vmatpush1.msra.mxu0 %v886
    %1055 = vmatprep.subr.mxu0 0.0
    %1056 = vmatpush1.msra.mxu0 %v887
    %1057 = vmatprep.subr.mxu0 0.0
    %1058 = vmatpush1.msra.mxu0 %v888
    %1059 = vmatprep.subr.mxu0 0.0
    %1060 = vmatpush1.msra.mxu0 %v889
    %1061 = vmatprep.subr.mxu0 0.0
    %1062 = vmatpush1.msra.mxu0 %v890
    %1063 = vmatprep.subr.mxu0 0.0
    %1064 = vmatpush1.msra.mxu0 %v891
    %1065 = vmatprep.subr.mxu0 0.0
    %1066 = vmatpush1.msra.mxu0 %v892
    %1067 = vmatprep.subr.mxu0 0.0
    %1068 = vmatpush1.msra.mxu0 %v893
    %1069 = vmatprep.subr.mxu0 0.0
    %1070 = vmatpush1.msra.mxu0 %v894
    %1071 = vmatprep.subr.mxu0 0.0
    %1072 = vmatpush1.msra.mxu0 %v895
    %1073 = vmatprep.subr.mxu0 0.0
    %1074 = vmatpush1.msra.mxu0 %v896
    %1075 = vmatprep.subr.mxu0 0.0
    %1076 = vmatpush1.msra.mxu0 %v897
    %1077 = vmatprep.mubr.f32.mxu0 %v824
    %1078 = vmatmul.mubr.f32.gmra.mrb[0].mxu0 %v823
    %v1079 = vpop.f32.mrb[0].mxu0
    %v1080 = vadd.f32 %v1005, %v1079
    %v1081 = vpop.f32.mrb[0].mxu0
    %1082 = vmatprep.mubr.f32.mxu0 %v830
    %1083 = vmatmul.mubr.f32.gmra.mrb[0].mxu0 %v829
    %v1084 = vpop.f32.mrb[0].mxu0
    %v1085 = vadd.f32 %v1010, %v1084
    %v1086 = vpop.f32.mrb[0].mxu0
    %1087 = vdwg.mxu0
    %1088 = vmatprep.subr.mxu0 0.0
    %1089 = vmatpush1.msra.mxu0 %v898
    %1090 = vmatprep.subr.mxu0 0.0
    %1091 = vmatpush1.msra.mxu0 %v899
    %1092 = vmatprep.subr.mxu0 0.0
    %1093 = vmatpush1.msra.mxu0 %v900
    %1094 = vmatprep.subr.mxu0 0.0
    %1095 = vmatpush1.msra.mxu0 %v901
    %1096 = vmatprep.subr.mxu0 0.0
    %1097 = vmatpush1.msra.mxu0 %v902
    %1098 = vmatprep.subr.mxu0 0.0
    %1099 = vmatpush1.msra.mxu0 %v903
    %1100 = vmatprep.subr.mxu0 0.0
    %1101 = vmatpush1.msra.mxu0 %v904
    %1102 = vmatprep.subr.mxu0 0.0
    %1103 = vmatpush1.msra.mxu0 %v905
    %1104 = vmatprep.subr.mxu0 0.0
    %1105 = vmatpush1.msra.mxu0 %v906
    %1106 = vmatprep.subr.mxu0 0.0
    %1107 = vmatpush1.msra.mxu0 %v907
    %1108 = vmatprep.subr.mxu0 0.0
    %1109 = vmatpush1.msra.mxu0 %v908
    %1110 = vmatprep.subr.mxu0 0.0
    %1111 = vmatpush1.msra.mxu0 %v909
    %1112 = vmatprep.subr.mxu0 0.0
    %1113 = vmatpush1.msra.mxu0 %v910
    %1114 = vmatprep.subr.mxu0 0.0
    %1115 = vmatpush1.msra.mxu0 %v911
    %1116 = vmatprep.subr.mxu0 0.0
    %1117 = vmatpush1.msra.mxu0 %v912
    %1118 = vmatprep.subr.mxu0 0.0
    %1119 = vmatpush1.msra.mxu0 %v913
    %1120 = vmatprep.subr.mxu0 0.0
    %1121 = vmatpush1.msra.mxu0 %v914
    %1122 = vmatprep.subr.mxu0 0.0
    %1123 = vmatpush1.msra.mxu0 %v915
    %1124 = vmatprep.subr.mxu0 0.0
    %1125 = vmatpush1.msra.mxu0 %v916
    %1126 = vmatprep.subr.mxu0 0.0
    %1127 = vmatpush1.msra.mxu0 %v917
    %1128 = vmatprep.subr.mxu0 0.0
    %1129 = vmatpush1.msra.mxu0 %v918
    %1130 = vmatprep.subr.mxu0 0.0
    %1131 = vmatpush1.msra.mxu0 %v919
    %1132 = vmatprep.subr.mxu0 0.0
    %1133 = vmatpush1.msra.mxu0 %v920
    %1134 = vmatprep.subr.mxu0 0.0
    %1135 = vmatpush1.msra.mxu0 %v921
    %1136 = vmatprep.subr.mxu0 0.0
    %1137 = vmatpush1.msra.mxu0 %v922
    %1138 = vmatprep.subr.mxu0 0.0
    %1139 = vmatpush1.msra.mxu0 %v923
    %1140 = vmatprep.subr.mxu0 0.0
    %1141 = vmatpush1.msra.mxu0 %v924
    %1142 = vmatprep.subr.mxu0 0.0
    %1143 = vmatpush1.msra.mxu0 %v925
    %1144 = vmatprep.subr.mxu0 0.0
    %1145 = vmatpush1.msra.mxu0 %v926
    %1146 = vmatprep.subr.mxu0 0.0
    %1147 = vmatpush1.msra.mxu0 %v927
    %1148 = vmatprep.subr.mxu0 0.0
    %1149 = vmatpush1.msra.mxu0 %v928
    %1150 = vmatprep.subr.mxu0 0.0
    %1151 = vmatpush1.msra.mxu0 %v929
    %1152 = vmatprep.mubr.f32.mxu0 %v826
    %1153 = vmatmul.mubr.f32.gmra.mrb[0].mxu0 %v825
    %v1154 = vpop.f32.mrb[0].mxu0
    %v1155 = vadd.f32 %v1080, %v1154
    %v1156 = vpop.f32.mrb[0].mxu0
    %1157 = vmatprep.mubr.f32.mxu0 %v832
    %1158 = vmatmul.mubr.f32.gmra.mrb[0].mxu0 %v831
    %v1159 = vpop.f32.mrb[0].mxu0
    %v1160 = vadd.f32 %v1085, %v1159
    %v1161 = vpop.f32.mrb[0].mxu0
    %1162 = vdwg.mxu0
    %v1163 = vmul.f32 %v819, %v1155
    %v1164 = vmul.f32 %v820, %v1160
    %v1165 = vld [vmem:[#allocation8] sm:$0xff]
    %v1166 = vld [vmem:[#allocation8 + $0x8] sm:$0xff]
    %v1167 = vld [vmem:[#allocation8 + $0x10] sm:$0xff]
    %v1168 = vld [vmem:[#allocation8 + $0x18] sm:$0xff]
    %v1169 = vld [vmem:[#allocation8 + $0x20] sm:$0xff]
    %v1170 = vld [vmem:[#allocation8 + $0x28] sm:$0xff]
    %v1171 = vld [vmem:[#allocation8 + $0x30] sm:$0xff]
    %v1172 = vld [vmem:[#allocation8 + $0x38] sm:$0xff]
    %v1173 = vld [vmem:[#allocation8 + $0x40] sm:$0xff]
    %v1174 = vld [vmem:[#allocation8 + $0x48] sm:$0xff]
    %v1175 = vld [vmem:[#allocation8 + $0x50] sm:$0xff]
    %v1176 = vld [vmem:[#allocation8 + $0x58] sm:$0xff]
    %s1177 = scalar_lea.vmem [#allocation10], 2304
    %v1178 = vld [vmem:[%s1177] sm:$0xff]
    %v1179 = vld [vmem:[%s1177 + $0x8] sm:$0xff]
    %v1180 = vld [vmem:[%s1177 + $0x10] sm:$0xff]
    %v1181 = vld [vmem:[%s1177 + $0x18] sm:$0xff]
    %v1182 = vld [vmem:[%s1177 + $0x20] sm:$0xff]
    %v1183 = vld [vmem:[%s1177 + $0x28] sm:$0xff]
    %v1184 = vld [vmem:[%s1177 + $0x30] sm:$0xff]
    %v1185 = vld [vmem:[%s1177 + $0x38] sm:$0xff]
    %v1186 = vld [vmem:[%s1177 + $0x40] sm:$0xff]
    %v1187 = vld [vmem:[%s1177 + $0x48] sm:$0xff]
    %v1188 = vld [vmem:[%s1177 + $0x50] sm:$0xff]
    %v1189 = vld [vmem:[%s1177 + $0x58] sm:$0xff]
    %v1190 = vld [vmem:[%s1177 + $0x60] sm:$0xff]
    %v1191 = vld [vmem:[%s1177 + $0x68] sm:$0xff]
    %v1192 = vld [vmem:[%s1177 + $0x70] sm:$0xff]
    %v1193 = vld [vmem:[%s1177 + $0x78] sm:$0xff]
    %v1194 = vld [vmem:[%s1177 + $0x80] sm:$0xff]
    %v1195 = vld [vmem:[%s1177 + $0x88] sm:$0xff]
    %v1196 = vld [vmem:[%s1177 + $0x90] sm:$0xff]
    %v1197 = vld [vmem:[%s1177 + $0x98] sm:$0xff]
    %v1198 = vld [vmem:[%s1177 + $0xa0] sm:$0xff]
    %v1199 = vld [vmem:[%s1177 + $0xa8] sm:$0xff]
    %v1200 = vld [vmem:[%s1177 + $0xb0] sm:$0xff]
    %v1201 = vld [vmem:[%s1177 + $0xb8] sm:$0xff]
    %v1202 = vld [vmem:[%s1177 + $0xc0] sm:$0xff]
    %v1203 = vld [vmem:[%s1177 + $0xc8] sm:$0xff]
    %v1204 = vld [vmem:[%s1177 + $0xd0] sm:$0xff]
    %v1205 = vld [vmem:[%s1177 + $0xd8] sm:$0xff]
    %v1206 = vld [vmem:[%s1177 + $0xe0] sm:$0xff]
    %v1207 = vld [vmem:[%s1177 + $0xe8] sm:$0xff]
    %v1208 = vld [vmem:[%s1177 + $0xf0] sm:$0xff]
    %v1209 = vld [vmem:[%s1177 + $0xf8] sm:$0xff]
    %v1210 = vld [vmem:[%s1177 + $0x100] sm:$0xff]
    %v1211 = vld [vmem:[%s1177 + $0x108] sm:$0xff]
    %v1212 = vld [vmem:[%s1177 + $0x110] sm:$0xff]
    %v1213 = vld [vmem:[%s1177 + $0x118] sm:$0xff]
    %v1214 = vld [vmem:[%s1177 + $0x120] sm:$0xff]
    %v1215 = vld [vmem:[%s1177 + $0x128] sm:$0xff]
    %v1216 = vld [vmem:[%s1177 + $0x130] sm:$0xff]
    %v1217 = vld [vmem:[%s1177 + $0x138] sm:$0xff]
    %v1218 = vld [vmem:[%s1177 + $0x140] sm:$0xff]
    %v1219 = vld [vmem:[%s1177 + $0x148] sm:$0xff]
    %v1220 = vld [vmem:[%s1177 + $0x150] sm:$0xff]
    %v1221 = vld [vmem:[%s1177 + $0x158] sm:$0xff]
    %v1222 = vld [vmem:[%s1177 + $0x160] sm:$0xff]
    %v1223 = vld [vmem:[%s1177 + $0x168] sm:$0xff]
    %v1224 = vld [vmem:[%s1177 + $0x170] sm:$0xff]
    %v1225 = vld [vmem:[%s1177 + $0x178] sm:$0xff]
    %v1226 = vld [vmem:[%s1177 + $0x180] sm:$0xff]
    %v1227 = vld [vmem:[%s1177 + $0x188] sm:$0xff]
    %v1228 = vld [vmem:[%s1177 + $0x190] sm:$0xff]
    %v1229 = vld [vmem:[%s1177 + $0x198] sm:$0xff]
    %v1230 = vld [vmem:[%s1177 + $0x1a0] sm:$0xff]
    %v1231 = vld [vmem:[%s1177 + $0x1a8] sm:$0xff]
    %v1232 = vld [vmem:[%s1177 + $0x1b0] sm:$0xff]
    %v1233 = vld [vmem:[%s1177 + $0x1b8] sm:$0xff]
    %v1234 = vld [vmem:[%s1177 + $0x1c0] sm:$0xff]
    %v1235 = vld [vmem:[%s1177 + $0x1c8] sm:$0xff]
    %v1236 = vld [vmem:[%s1177 + $0x1d0] sm:$0xff]
    %v1237 = vld [vmem:[%s1177 + $0x1d8] sm:$0xff]
    %v1238 = vld [vmem:[%s1177 + $0x1e0] sm:$0xff]
    %v1239 = vld [vmem:[%s1177 + $0x1e8] sm:$0xff]
    %v1240 = vld [vmem:[%s1177 + $0x1f0] sm:$0xff]
    %v1241 = vld [vmem:[%s1177 + $0x1f8] sm:$0xff]
    %v1242 = vld [vmem:[%s1177 + $0x200] sm:$0xff]
    %v1243 = vld [vmem:[%s1177 + $0x208] sm:$0xff]
    %v1244 = vld [vmem:[%s1177 + $0x210] sm:$0xff]
    %v1245 = vld [vmem:[%s1177 + $0x218] sm:$0xff]
    %v1246 = vld [vmem:[%s1177 + $0x220] sm:$0xff]
    %v1247 = vld [vmem:[%s1177 + $0x228] sm:$0xff]
    %v1248 = vld [vmem:[%s1177 + $0x230] sm:$0xff]
    %v1249 = vld [vmem:[%s1177 + $0x238] sm:$0xff]
    %v1250 = vld [vmem:[%s1177 + $0x240] sm:$0xff]
    %v1251 = vld [vmem:[%s1177 + $0x248] sm:$0xff]
    %v1252 = vld [vmem:[%s1177 + $0x250] sm:$0xff]
    %v1253 = vld [vmem:[%s1177 + $0x258] sm:$0xff]
    %v1254 = vld [vmem:[%s1177 + $0x260] sm:$0xff]
    %v1255 = vld [vmem:[%s1177 + $0x268] sm:$0xff]
    %v1256 = vld [vmem:[%s1177 + $0x270] sm:$0xff]
    %v1257 = vld [vmem:[%s1177 + $0x278] sm:$0xff]
    %v1258 = vld [vmem:[%s1177 + $0x280] sm:$0xff]
    %v1259 = vld [vmem:[%s1177 + $0x288] sm:$0xff]
    %v1260 = vld [vmem:[%s1177 + $0x290] sm:$0xff]
    %v1261 = vld [vmem:[%s1177 + $0x298] sm:$0xff]
    %v1262 = vld [vmem:[%s1177 + $0x2a0] sm:$0xff]
    %v1263 = vld [vmem:[%s1177 + $0x2a8] sm:$0xff]
    %v1264 = vld [vmem:[%s1177 + $0x2b0] sm:$0xff]
    %v1265 = vld [vmem:[%s1177 + $0x2b8] sm:$0xff]
    %v1266 = vld [vmem:[%s1177 + $0x2c0] sm:$0xff]
    %v1267 = vld [vmem:[%s1177 + $0x2c8] sm:$0xff]
    %v1268 = vld [vmem:[%s1177 + $0x2d0] sm:$0xff]
    %v1269 = vld [vmem:[%s1177 + $0x2d8] sm:$0xff]
    %v1270 = vld [vmem:[%s1177 + $0x2e0] sm:$0xff]
    %v1271 = vld [vmem:[%s1177 + $0x2e8] sm:$0xff]
    %v1272 = vld [vmem:[%s1177 + $0x2f0] sm:$0xff]
    %v1273 = vld [vmem:[%s1177 + $0x2f8] sm:$0xff]
    %s1274 = scalar_lea.vmem [#allocation11], 3
    %v1275 = vld [vmem:[%s1274] sm:$0x1]
    %v1277 = vlaneseq
    %v1278 = vshrl.u32 %v1277, 7
    %v1279 = vsub.s32 0, %v1278
    %v1280 = vrot.slane %v1275, %v1279
    %1282 = vmatprep.subr.mxu0 0.0
    %1283 = vmatpush1.msra.mxu0 %v1178
    %1284 = vmatprep.subr.mxu0 0.0
    %1285 = vmatpush1.msra.mxu0 %v1179
    %1286 = vmatprep.subr.mxu0 0.0
    %1287 = vmatpush1.msra.mxu0 %v1180
    %1288 = vmatprep.subr.mxu0 0.0
    %1289 = vmatpush1.msra.mxu0 %v1181
    %1290 = vmatprep.subr.mxu0 0.0
    %1291 = vmatpush1.msra.mxu0 %v1182
    %1292 = vmatprep.subr.mxu0 0.0
    %1293 = vmatpush1.msra.mxu0 %v1183
    %1294 = vmatprep.subr.mxu0 0.0
    %1295 = vmatpush1.msra.mxu0 %v1184
    %1296 = vmatprep.subr.mxu0 0.0
    %1297 = vmatpush1.msra.mxu0 %v1185
    %1298 = vmatprep.subr.mxu0 0.0
    %1299 = vmatpush1.msra.mxu0 %v1186
    %1300 = vmatprep.subr.mxu0 0.0
    %1301 = vmatpush1.msra.mxu0 %v1187
    %1302 = vmatprep.subr.mxu0 0.0
    %1303 = vmatpush1.msra.mxu0 %v1188
    %1304 = vmatprep.subr.mxu0 0.0
    %1305 = vmatpush1.msra.mxu0 %v1189
    %1306 = vmatprep.subr.mxu0 0.0
    %1307 = vmatpush1.msra.mxu0 %v1190
    %1308 = vmatprep.subr.mxu0 0.0
    %1309 = vmatpush1.msra.mxu0 %v1191
    %1310 = vmatprep.subr.mxu0 0.0
    %1311 = vmatpush1.msra.mxu0 %v1192
    %1312 = vmatprep.subr.mxu0 0.0
    %1313 = vmatpush1.msra.mxu0 %v1193
    %1314 = vmatprep.subr.mxu0 0.0
    %1315 = vmatpush1.msra.mxu0 %v1194
    %1316 = vmatprep.subr.mxu0 0.0
    %1317 = vmatpush1.msra.mxu0 %v1195
    %1318 = vmatprep.subr.mxu0 0.0
    %1319 = vmatpush1.msra.mxu0 %v1196
    %1320 = vmatprep.subr.mxu0 0.0
    %1321 = vmatpush1.msra.mxu0 %v1197
    %1322 = vmatprep.subr.mxu0 0.0
    %1323 = vmatpush1.msra.mxu0 %v1198
    %1324 = vmatprep.subr.mxu0 0.0
    %1325 = vmatpush1.msra.mxu0 %v1199
    %1326 = vmatprep.subr.mxu0 0.0
    %1327 = vmatpush1.msra.mxu0 %v1200
    %1328 = vmatprep.subr.mxu0 0.0
    %1329 = vmatpush1.msra.mxu0 %v1201
    %1330 = vmatprep.subr.mxu0 0.0
    %1331 = vmatpush1.msra.mxu0 %v1202
    %1332 = vmatprep.subr.mxu0 0.0
    %1333 = vmatpush1.msra.mxu0 %v1203
    %1334 = vmatprep.subr.mxu0 0.0
    %1335 = vmatpush1.msra.mxu0 %v1204
    %1336 = vmatprep.subr.mxu0 0.0
    %1337 = vmatpush1.msra.mxu0 %v1205
    %1338 = vmatprep.subr.mxu0 0.0
    %1339 = vmatpush1.msra.mxu0 %v1206
    %1340 = vmatprep.subr.mxu0 0.0
    %1341 = vmatpush1.msra.mxu0 %v1207
    %1342 = vmatprep.subr.mxu0 0.0
    %1343 = vmatpush1.msra.mxu0 %v1208
    %1344 = vmatprep.subr.mxu0 0.0
    %1345 = vmatpush1.msra.mxu0 %v1209
    %1346 = vmatprep.mubr.f32.mxu0 %v1166
    %1347 = vmatmul.mubr.f32.gmra.mrb[0].mxu0 %v1165
    %v1348 = vpop.f32.mrb[0].mxu0
    %v1349 = vadd.f32 %v1280, %v1348
    %v1350 = vpop.f32.mrb[0].mxu0
    %1351 = vmatprep.mubr.f32.mxu0 %v1172
    %1352 = vmatmul.mubr.f32.gmra.mrb[0].mxu0 %v1171
    %v1353 = vpop.f32.mrb[0].mxu0
    %v1354 = vadd.f32 %v1280, %v1353
    %v1355 = vpop.f32.mrb[0].mxu0
    %1356 = vdwg.mxu0
    %1357 = vmatprep.subr.mxu0 0.0
    %1358 = vmatpush1.msra.mxu0 %v1210
    %1359 = vmatprep.subr.mxu0 0.0
    %1360 = vmatpush1.msra.mxu0 %v1211
    %1361 = vmatprep.subr.mxu0 0.0
    %1362 = vmatpush1.msra.mxu0 %v1212
    %1363 = vmatprep.subr.mxu0 0.0
    %1364 = vmatpush1.msra.mxu0 %v1213
    %1365 = vmatprep.subr.mxu0 0.0
    %1366 = vmatpush1.msra.mxu0 %v1214
    %1367 = vmatprep.subr.mxu0 0.0
    %1368 = vmatpush1.msra.mxu0 %v1215
    %1369 = vmatprep.subr.mxu0 0.0
    %1370 = vmatpush1.msra.mxu0 %v1216
    %1371 = vmatprep.subr.mxu0 0.0
    %1372 = vmatpush1.msra.mxu0 %v1217
    %1373 = vmatprep.subr.mxu0 0.0
    %1374 = vmatpush1.msra.mxu0 %v1218
    %1375 = vmatprep.subr.mxu0 0.0
    %1376 = vmatpush1.msra.mxu0 %v1219
    %1377 = vmatprep.subr.mxu0 0.0
    %1378 = vmatpush1.msra.mxu0 %v1220
    %1379 = vmatprep.subr.mxu0 0.0
    %1380 = vmatpush1.msra.mxu0 %v1221
    %1381 = vmatprep.subr.mxu0 0.0
    %1382 = vmatpush1.msra.mxu0 %v1222
    %1383 = vmatprep.subr.mxu0 0.0
    %1384 = vmatpush1.msra.mxu0 %v1223
    %1385 = vmatprep.subr.mxu0 0.0
    %1386 = vmatpush1.msra.mxu0 %v1224
    %1387 = vmatprep.subr.mxu0 0.0
    %1388 = vmatpush1.msra.mxu0 %v1225
    %1389 = vmatprep.subr.mxu0 0.0
    %1390 = vmatpush1.msra.mxu0 %v1226
    %1391 = vmatprep.subr.mxu0 0.0
    %1392 = vmatpush1.msra.mxu0 %v1227
    %1393 = vmatprep.subr.mxu0 0.0
    %1394 = vmatpush1.msra.mxu0 %v1228
    %1395 = vmatprep.subr.mxu0 0.0
    %1396 = vmatpush1.msra.mxu0 %v1229
    %1397 = vmatprep.subr.mxu0 0.0
    %1398 = vmatpush1.msra.mxu0 %v1230
    %1399 = vmatprep.subr.mxu0 0.0
    %1400 = vmatpush1.msra.mxu0 %v1231
    %1401 = vmatprep.subr.mxu0 0.0
    %1402 = vmatpush1.msra.mxu0 %v1232
    %1403 = vmatprep.subr.mxu0 0.0
    %1404 = vmatpush1.msra.mxu0 %v1233
    %1405 = vmatprep.subr.mxu0 0.0
    %1406 = vmatpush1.msra.mxu0 %v1234
    %1407 = vmatprep.subr.mxu0 0.0
    %1408 = vmatpush1.msra.mxu0 %v1235
    %1409 = vmatprep.subr.mxu0 0.0
    %1410 = vmatpush1.msra.mxu0 %v1236
    %1411 = vmatprep.subr.mxu0 0.0
    %1412 = vmatpush1.msra.mxu0 %v1237
    %1413 = vmatprep.subr.mxu0 0.0
    %1414 = vmatpush1.msra.mxu0 %v1238
    %1415 = vmatprep.subr.mxu0 0.0
    %1416 = vmatpush1.msra.mxu0 %v1239
    %1417 = vmatprep.subr.mxu0 0.0
    %1418 = vmatpush1.msra.mxu0 %v1240
    %1419 = vmatprep.subr.mxu0 0.0
    %1420 = vmatpush1.msra.mxu0 %v1241
    %1421 = vmatprep.mubr.f32.mxu0 %v1168
    %1422 = vmatmul.mubr.f32.gmra.mrb[0].mxu0 %v1167
    %v1423 = vpop.f32.mrb[0].mxu0
    %v1424 = vadd.f32 %v1349, %v1423
    %v1425 = vpop.f32.mrb[0].mxu0
    %1426 = vmatprep.mubr.f32.mxu0 %v1174
    %1427 = vmatmul.mubr.f32.gmra.mrb[0].mxu0 %v1173
    %v1428 = vpop.f32.mrb[0].mxu0
    %v1429 = vadd.f32 %v1354, %v1428
    %v1430 = vpop.f32.mrb[0].mxu0
    %1431 = vdwg.mxu0
    %1432 = vmatprep.subr.mxu0 0.0
    %1433 = vmatpush1.msra.mxu0 %v1242
    %1434 = vmatprep.subr.mxu0 0.0
    %1435 = vmatpush1.msra.mxu0 %v1243
    %1436 = vmatprep.subr.mxu0 0.0
    %1437 = vmatpush1.msra.mxu0 %v1244
    %1438 = vmatprep.subr.mxu0 0.0
    %1439 = vmatpush1.msra.mxu0 %v1245
    %1440 = vmatprep.subr.mxu0 0.0
    %1441 = vmatpush1.msra.mxu0 %v1246
    %1442 = vmatprep.subr.mxu0 0.0
    %1443 = vmatpush1.msra.mxu0 %v1247
    %1444 = vmatprep.subr.mxu0 0.0
    %1445 = vmatpush1.msra.mxu0 %v1248
    %1446 = vmatprep.subr.mxu0 0.0
    %1447 = vmatpush1.msra.mxu0 %v1249
    %1448 = vmatprep.subr.mxu0 0.0
    %1449 = vmatpush1.msra.mxu0 %v1250
    %1450 = vmatprep.subr.mxu0 0.0
    %1451 = vmatpush1.msra.mxu0 %v1251
    %1452 = vmatprep.subr.mxu0 0.0
    %1453 = vmatpush1.msra.mxu0 %v1252
    %1454 = vmatprep.subr.mxu0 0.0
    %1455 = vmatpush1.msra.mxu0 %v1253
    %1456 = vmatprep.subr.mxu0 0.0
    %1457 = vmatpush1.msra.mxu0 %v1254
    %1458 = vmatprep.subr.mxu0 0.0
    %1459 = vmatpush1.msra.mxu0 %v1255
    %1460 = vmatprep.subr.mxu0 0.0
    %1461 = vmatpush1.msra.mxu0 %v1256
    %1462 = vmatprep.subr.mxu0 0.0
    %1463 = vmatpush1.msra.mxu0 %v1257
    %1464 = vmatprep.subr.mxu0 0.0
    %1465 = vmatpush1.msra.mxu0 %v1258
    %1466 = vmatprep.subr.mxu0 0.0
    %1467 = vmatpush1.msra.mxu0 %v1259
    %1468 = vmatprep.subr.mxu0 0.0
    %1469 = vmatpush1.msra.mxu0 %v1260
    %1470 = vmatprep.subr.mxu0 0.0
    %1471 = vmatpush1.msra.mxu0 %v1261
    %1472 = vmatprep.subr.mxu0 0.0
    %1473 = vmatpush1.msra.mxu0 %v1262
    %1474 = vmatprep.subr.mxu0 0.0
    %1475 = vmatpush1.msra.mxu0 %v1263
    %1476 = vmatprep.subr.mxu0 0.0
    %1477 = vmatpush1.msra.mxu0 %v1264
    %1478 = vmatprep.subr.mxu0 0.0
    %1479 = vmatpush1.msra.mxu0 %v1265
    %1480 = vmatprep.subr.mxu0 0.0
    %1481 = vmatpush1.msra.mxu0 %v1266
    %1482 = vmatprep.subr.mxu0 0.0
    %1483 = vmatpush1.msra.mxu0 %v1267
    %1484 = vmatprep.subr.mxu0 0.0
    %1485 = vmatpush1.msra.mxu0 %v1268
    %1486 = vmatprep.subr.mxu0 0.0
    %1487 = vmatpush1.msra.mxu0 %v1269
    %1488 = vmatprep.subr.mxu0 0.0
    %1489 = vmatpush1.msra.mxu0 %v1270
    %1490 = vmatprep.subr.mxu0 0.0
    %1491 = vmatpush1.msra.mxu0 %v1271
    %1492 = vmatprep.subr.mxu0 0.0
    %1493 = vmatpush1.msra.mxu0 %v1272
    %1494 = vmatprep.subr.mxu0 0.0
    %1495 = vmatpush1.msra.mxu0 %v1273
    %1496 = vmatprep.mubr.f32.mxu0 %v1170
    %1497 = vmatmul.mubr.f32.gmra.mrb[0].mxu0 %v1169
    %v1498 = vpop.f32.mrb[0].mxu0
    %v1499 = vadd.f32 %v1424, %v1498
    %v1500 = vpop.f32.mrb[0].mxu0
    %1501 = vmatprep.mubr.f32.mxu0 %v1176
    %1502 = vmatmul.mubr.f32.gmra.mrb[0].mxu0 %v1175
    %v1503 = vpop.f32.mrb[0].mxu0
    %v1504 = vadd.f32 %v1429, %v1503
    %v1505 = vpop.f32.mrb[0].mxu0
    %1506 = vdwg.mxu0
    %v1507 = vmul.f32 %v1163, %v1499
    %v1508 = vmul.f32 %v1164, %v1504
    %v1509 = vld [vmem:[#allocation13] sm:$0xff]
    %v1510 = vld [vmem:[#allocation13 + $0x8] sm:$0xff]
    %v1511 = vld [vmem:[#allocation13 + $0x10] sm:$0xff]
    %v1512 = vld [vmem:[#allocation13 + $0x18] sm:$0xff]
    %v1513 = vld [vmem:[#allocation13 + $0x20] sm:$0xff]
    %v1514 = vld [vmem:[#allocation13 + $0x28] sm:$0xff]
    %v1515 = vld [vmem:[#allocation13 + $0x30] sm:$0xff]
    %v1516 = vld [vmem:[#allocation13 + $0x38] sm:$0xff]
    %v1517 = vld [vmem:[#allocation13 + $0x40] sm:$0xff]
    %v1518 = vld [vmem:[#allocation13 + $0x48] sm:$0xff]
    %v1519 = vld [vmem:[#allocation13 + $0x50] sm:$0xff]
    %v1520 = vld [vmem:[#allocation13 + $0x58] sm:$0xff]
    %v1521 = vld [vmem:[#allocation13 + $0x60] sm:$0xff]
    %v1522 = vld [vmem:[#allocation13 + $0x68] sm:$0xff]
    %v1523 = vld [vmem:[#allocation13 + $0x70] sm:$0xff]
    %v1524 = vld [vmem:[#allocation13 + $0x78] sm:$0xff]
    %v1525 = vld [vmem:[#allocation14] sm:$0x1]
    %v1527 = vlaneseq
    %v1528 = vshrl.u32 %v1527, 7
    %v1529 = vsub.s32 0, %v1528
    %v1530 = vrot.slane %v1525, %v1529
    %1532 = vmatprep.subr.mxu0 0.0
    %1533 = vmatpush1.msra.mxu0 %v1509
    %1534 = vmatprep.subr.mxu0 0.0
    %1535 = vmatpush1.msra.mxu0 %v1510
    %1536 = vmatprep.subr.mxu0 0.0
    %1537 = vmatpush1.msra.mxu0 %v1511
    %1538 = vmatprep.subr.mxu0 0.0
    %1539 = vmatpush1.msra.mxu0 %v1512
    %1540 = vmatprep.subr.mxu0 0.0
    %1541 = vmatpush1.msra.mxu0 %v1513
    %1542 = vmatprep.subr.mxu0 0.0
    %1543 = vmatpush1.msra.mxu0 %v1514
    %1544 = vmatprep.subr.mxu0 0.0
    %1545 = vmatpush1.msra.mxu0 %v1515
    %1546 = vmatprep.subr.mxu0 0.0
    %1547 = vmatpush1.msra.mxu0 %v1516
    %1548 = vmatprep.subr.mxu0 0.0
    %1549 = vmatpush1.msra.mxu0 %v1517
    %1550 = vmatprep.subr.mxu0 0.0
    %1551 = vmatpush1.msra.mxu0 %v1518
    %1552 = vmatprep.subr.mxu0 0.0
    %1553 = vmatpush1.msra.mxu0 %v1519
    %1554 = vmatprep.subr.mxu0 0.0
    %1555 = vmatpush1.msra.mxu0 %v1520
    %1556 = vmatprep.subr.mxu0 0.0
    %1557 = vmatpush1.msra.mxu0 %v1521
    %1558 = vmatprep.subr.mxu0 0.0
    %1559 = vmatpush1.msra.mxu0 %v1522
    %1560 = vmatprep.subr.mxu0 0.0
    %1561 = vmatpush1.msra.mxu0 %v1523
    %1562 = vmatprep.subr.mxu0 0.0
    %1563 = vmatpush1.msra.mxu0 %v1524
    %1564 = vmatprep.subr.mxu0 0.0
    %1565 = vmatpush1.msra.mxu0 0.0
    %1566 = vmatprep.subr.mxu0 0.0
    %1567 = vmatpush1.msra.mxu0 0.0
    %1568 = vmatprep.subr.mxu0 0.0
    %1569 = vmatpush1.msra.mxu0 0.0
    %1570 = vmatprep.subr.mxu0 0.0
    %1571 = vmatpush1.msra.mxu0 0.0
    %1572 = vmatprep.subr.mxu0 0.0
    %1573 = vmatpush1.msra.mxu0 0.0
    %1574 = vmatprep.subr.mxu0 0.0
    %1575 = vmatpush1.msra.mxu0 0.0
    %1576 = vmatprep.subr.mxu0 0.0
    %1577 = vmatpush1.msra.mxu0 0.0
    %1578 = vmatprep.subr.mxu0 0.0
    %1579 = vmatpush1.msra.mxu0 0.0
    %1580 = vmatprep.subr.mxu0 0.0
    %1581 = vmatpush1.msra.mxu0 0.0
    %1582 = vmatprep.subr.mxu0 0.0
    %1583 = vmatpush1.msra.mxu0 0.0
    %1584 = vmatprep.subr.mxu0 0.0
    %1585 = vmatpush1.msra.mxu0 0.0
    %1586 = vmatprep.subr.mxu0 0.0
    %1587 = vmatpush1.msra.mxu0 0.0
    %1588 = vmatprep.subr.mxu0 0.0
    %1589 = vmatpush1.msra.mxu0 0.0
    %1590 = vmatprep.subr.mxu0 0.0
    %1591 = vmatpush1.msra.mxu0 0.0
    %1592 = vmatprep.subr.mxu0 0.0
    %1593 = vmatpush1.msra.mxu0 0.0
    %1594 = vmatprep.subr.mxu0 0.0
    %1595 = vmatpush1.msra.mxu0 0.0
    %1596 = vmatprep.mubr.f32.mxu0 0.0
    %1597 = vmatmul.mubr.f32.gmra.mrb[0].mxu0 %v1507
    %v1598 = vpop.f32.mrb[0].mxu0
    %v1599 = vadd.f32 %v1530, %v1598
    %v1600 = vpop.f32.mrb[0].mxu0
    %1601 = vmatprep.mubr.f32.mxu0 0.0
    %1602 = vmatmul.mubr.f32.gmra.mrb[0].mxu0 %v1508
    %v1603 = vpop.f32.mrb[0].mxu0
    %v1604 = vadd.f32 %v1530, %v1603
    %v1605 = vpop.f32.mrb[0].mxu0
    %1606 = vdwg.mxu0
    %1607 = vst [vmem:[#allocation16] sm:$0xff] %v1599
    %1608 = vst [vmem:[#allocation16 + $0x8] sm:$0xff] %v1604
    // Predicated region
    $region66: #{tpu_custom_call.1} parent=1 // pred_check
      _
    $region67: #{tpu_custom_call.1} parent=1 // pred_check_branch
      %1610 = sbr.rel (0) target = $region69
    $region68: #{tpu_custom_call.1} parent=1 // pred_region
      %s1612 = ssub.s32 256, 256
      %1613 = vsyncadd [#allocation4], %s1612
      %s1614 = sshll.u32 [#allocation16], 4
      %s1615 = int_to_ptr.vmem [resolvable:$true] %s1614
      %1620 = dma.vmem_to_hbm [thread:$0]  %s1615, 256, %s8, [#allocation4], 128, 128, 8
    $region69: #{tpu_custom_call.1} parent=1 // pred_fallthru
      _
    // Predicated region
    $region70: #{tpu_custom_call.1} parent=1 // pred_check
      _
    $region71: #{tpu_custom_call.1} parent=1 // pred_check_branch
      %1622 = sbr.rel (0) target = $region73
    $region72: #{tpu_custom_call.1} parent=1 // pred_region
      %1623 = dma.done [#allocation4], 256
    $region73: #{tpu_custom_call.1} parent=1 // pred_fallthru
      _
    %1624 = vsyncpa [#allocation3], 1
    %1625 = vsyncpa [#allocation6], 1
    %1626 = vsyncpa [#allocation9], 1
    %1627 = vsyncpa [#allocation12], 1
    %1628 = vsyncpa [#allocation15], 1
    %1629 = vsyncpa [#allocation4], 1

</llo_original>
